<compile_context>
chip_gen: v7x
topology: tpu7x:2x2x1
jax: 0.10.0
libtpu: 0.0.40
codegen_flags: <defaults>
</compile_context>

<pallas_src>
import jax
import jax.numpy as jnp
import numpy as np
from jax.experimental import pallas as pl
from jax.experimental.pallas import tpu as pltpu

WINDOW_SIZE = 11
SIGMA = 1.5
C1 = 0.01 ** 2
C2 = 0.03 ** 2


def _gaussian_1d_np(window_size, sigma):
    # Matches gaussian() in the PyTorch reference.
    x = np.arange(window_size, dtype=np.float64)
    g = np.exp(-((x - window_size // 2) ** 2) / (2.0 * sigma ** 2))
    return g / g.sum()


def _band_matrix_np(g, n, window_size):
    # B[i_in, j_out] = g[i_in - j_out + pad] inside the window, else 0.
    # x @ B (or B.T @ x) is the zero-padded 1-D cross-correlation performed by
    # F.conv3d(padding=window_size//2) along that axis.
    pad = window_size // 2
    idx = np.arange(n)
    diff = idx[:, None] - idx[None, :] + pad
    valid = (diff >= 0) & (diff < window_size)
    return np.where(valid, g[np.clip(diff, 0, window_size - 1)], 0.0)


def _ssim3d_kernel(x1_ref, x2_ref, mdh_ref, bwb_ref, o_ref):
    """One grid step processes B packed volumes laid out as (D*H, B*W)."""
    x1 = x1_ref[0]                                  # (DH, BW) float32
    x2 = x2_ref[0]
    mdh = mdh_ref[...].astype(jnp.float32)          # (DH, DH) = kron(B_D,B_H)^T (bf16 stored)
    bwb = bwb_ref[...].astype(jnp.float32)          # (BW, BW) = kron(I_B, B_W) (bf16 stored)
    dh, bw = x1.shape

    # ---- D/H Gaussian conv: ONE wide-RHS MXU matmul over all five fields ----
    # Lane-packing the five fields keeps mdh weight-stationary and gives a
    # 5*BW-lane RHS that fills the 256-wide MXU on v6e/v7x.
    fields = jnp.concatenate([x1, x2, x1 * x1, x2 * x2, x1 * x2], axis=1)   # (DH, 5*BW)
    t = jnp.dot(mdh, fields, preferred_element_type=jnp.float32)            # (DH, 5*BW)

    # ---- W Gaussian conv: ONE tall-LHS matmul with block-diag kron(I_B,B_W) --
    # Re-pack the five intermediates along sublanes (vreg-aligned moves) so the
    # bwb weights are pushed into the MXU once per grid step.
    t5 = jnp.concatenate([t[:, i * bw:(i + 1) * bw] for i in range(5)], axis=0)  # (5*DH, BW)
    c = jnp.dot(t5, bwb, preferred_element_type=jnp.float32)                # (5*DH, BW)

    mu1 = c[0 * dh:1 * dh]
    mu2 = c[1 * dh:2 * dh]
    e11 = c[2 * dh:3 * dh]
    e22 = c[3 * dh:4 * dh]
    e12 = c[4 * dh:5 * dh]

    mu1_sq = mu1 * mu1
    mu2_sq = mu2 * mu2
    mu1_mu2 = mu1 * mu2
    sigma1_sq = e11 - mu1_sq
    sigma2_sq = e22 - mu2_sq
    sigma12 = e12 - mu1_mu2

    num = (2.0 * mu1_mu2 + C1) * (2.0 * sigma12 + C2)
    den = (mu1_sq + mu2_sq + C1) * (sigma1_sq + sigma2_sq + C2)
    ssim_map = num * pl.reciprocal(den, approx=True)

    # Lane-dense per-step partial sums written as a sublane-aligned (8, BW)
    # block: row 0 carries the column sums, rows 1..7 are zero.  The per-volume
    # and global reductions are a tiny XLA-side epilogue.
    colsum = jnp.sum(ssim_map, axis=0, keepdims=True)                       # (1, BW)
    o_ref[...] = jnp.concatenate(
        [colsum, jnp.zeros((7, bw), jnp.float32)], axis=0)


def _ssim3d_loss_impl(img1, img2, window_size):
    N, C, D, H, W = img1.shape
    NC = N * C
    DH = D * H

    # Lane packing: B volumes per grid step along lanes, but (a) never pack
    # zero-padded volumes (B <= NC) and (b) keep G >= 2 whenever NC >= 2 so
    # both v7x TensorCores get a "parallel" grid step.
    lane_target = max(1, 128 // W) if W < 128 else 1
    B = max(1, min(lane_target, (NC + 1) // 2))
    G = -(-NC // B)                       # number of grid steps
    NCpad = G * B
    BW = B * W

    # Host-side (NumPy) constants -> embedded literals, no per-call XLA kron.
    # bf16 storage: DEFAULT MXU precision truncates operands to bf16 anyway,
    # so this halves the constants' DMA/VMEM at no extra accuracy cost.
    g = _gaussian_1d_np(window_size, SIGMA)
    bd = _band_matrix_np(g, D, window_size)
    bh = _band_matrix_np(g, H, window_size)
    bw_band = _band_matrix_np(g, W, window_size)
    mdh = jnp.asarray(np.kron(bd, bh).T, dtype=jnp.bfloat16)                # (DH, DH)
    bwb = jnp.asarray(np.kron(np.eye(B), bw_band), dtype=jnp.bfloat16)      # (BW, BW)

    def pack(img):
        x = img.reshape(NC, D, H, W).astype(jnp.float32)
        if NCpad > NC:
            x = jnp.pad(x, ((0, NCpad - NC), (0, 0), (0, 0), (0, 0)))
        # (G, B, D, H, W) -> (G, D, H, B, W) -> (G, D*H, B*W): lane = b*W + w.
        x = x.reshape(G, B, D, H, W).transpose(0, 2, 3, 1, 4)
        return x.reshape(G, DH, BW)

    x1 = pack(img1)
    x2 = pack(img2)

    flops = G * (2 * DH * DH * (5 * BW) + 2 * (5 * DH) * BW * BW + 30 * DH * BW)
    bytes_accessed = 4 * 2 * G * DH * BW + 2 * (DH * DH + BW * BW) + 4 * G * 8 * BW
    cost = pl.CostEstimate(
        flops=flops, transcendentals=G * DH * BW, bytes_accessed=bytes_accessed)

    col_sums = pl.pallas_call(
        _ssim3d_kernel,
        out_shape=jax.ShapeDtypeStruct((G * 8, BW), jnp.float32),
        grid_spec=pltpu.PrefetchScalarGridSpec(
            num_scalar_prefetch=0,
            grid=(G,),
            in_specs=[
                pl.BlockSpec((1, DH, BW), lambda i: (i, 0, 0)),
                pl.BlockSpec((1, DH, BW), lambda i: (i, 0, 0)),
                pl.BlockSpec((DH, DH), lambda i: (0, 0)),
                pl.BlockSpec((BW, BW), lambda i: (0, 0)),
            ],
            out_specs=pl.BlockSpec((8, BW), lambda i: (i, 0)),
        ),
        compiler_params=pltpu.CompilerParams(
            dimension_semantics=("parallel",),
            # No-op on v6e/v7x (32 MiB scoped default) but doubles the
            # headroom on v5e's 16 MiB default as DH grows.
            vmem_limit_bytes=32 * 1024 * 1024,
        ),
        cost_estimate=cost,
    )(x1, x2, mdh, bwb)

    # (G*8, BW): row 0 of each 8-row block holds the lane column sums.
    per_volume = col_sums.reshape(G, 8, B, W).sum(axis=(1, 3)).reshape(G * B)
    total = per_volume[:NC].sum()
    # size_average=True  ->  loss = 1 - mean(ssim_map)
    return 1.0 - total / float(NC * D * H * W)


@jax.jit
def ssim3d_loss(img1, img2):
    """Pallas implementation of SSIM3D().forward(img1, img2) (size_average=True)."""
    return _ssim3d_loss_impl(img1, img2, WINDOW_SIZE)


def ssim3d_loss_ref(img1, img2, window_size=WINDOW_SIZE):
    """Pure-JAX reference mirroring the PyTorch _ssim_3D exactly."""
    N, C, D, H, W = img1.shape
    g = jnp.asarray(_gaussian_1d_np(window_size, SIGMA), dtype=jnp.float32)
    w3 = g[:, None, None] * g[None, :, None] * g[None, None, :]
    win = jnp.broadcast_to(
        w3[None, None], (C, 1, window_size, window_size, window_size)
    ).astype(jnp.float32)
    pad = window_size // 2

    def conv(x):
        return jax.lax.conv_general_dilated(
            x, win, (1, 1, 1), [(pad, pad)] * 3,
            dimension_numbers=("NCDHW", "OIDHW", "NCDHW"),
            feature_group_count=C)

    mu1, mu2 = conv(img1), conv(img2)
    mu1_sq, mu2_sq, mu1_mu2 = mu1 * mu1, mu2 * mu2, mu1 * mu2
    sigma1_sq = conv(img1 * img1) - mu1_sq
    sigma2_sq = conv(img2 * img2) - mu2_sq
    sigma12 = conv(img1 * img2) - mu1_mu2
    ssim_map = ((2 * mu1_mu2 + C1) * (2 * sigma12 + C2)) / (
        (mu1_sq + mu2_sq + C1) * (sigma1_sq + sigma2_sq + C2))
    return 1.0 - jnp.mean(ssim_map)


if __name__ == "__main__":
    key = jax.random.PRNGKey(0)
    k1, k2 = jax.random.split(key)
    N, C, D, H, W = 2, 2, 16, 16, 16
    img1 = jax.random.uniform(k1, (N, C, D, H, W), dtype=jnp.float32)
    img2 = jax.random.uniform(k2, (N, C, D, H, W), dtype=jnp.float32)

    loss = jax.block_until_ready(ssim3d_loss(img1, img2))
    ref = jax.block_until_ready(ssim3d_loss_ref(img1, img2))
    np.testing.assert_allclose(np.asarray(loss), np.asarray(ref), atol=1e-2, rtol=0)
    print("KERNEL_OK")
</pallas_src>

<mosaic_0001>
module attributes {stable_mosaic.version = 11 : i64} {
  func.func @_ssim3d_kernel(%arg0: i32, %arg1: memref<1x256x32xf32, #tpu.memory_space<vmem>>, %arg2: memref<1x256x32xf32, #tpu.memory_space<vmem>>, %arg3: memref<256x256xbf16, #tpu.memory_space<vmem>>, %arg4: memref<32x32xbf16, #tpu.memory_space<vmem>>, %arg5: memref<8x32xf32, #tpu.memory_space<vmem>>) attributes {dimension_semantics = [#tpu.dimension_semantics<parallel>], iteration_bounds = array<i64: 2>, scalar_prefetch = 0 : i64, scratch_operands = 0 : i64, tpu.core_type = #tpu.core_type<tc>, window_params = [{transform_indices = @transform_0, window_bounds = array<i64: 1, 256, 32>}, {transform_indices = @transform_1, window_bounds = array<i64: 1, 256, 32>}, {pipeline_mode = #tpu.pipeline_mode<synchronous>, transform_indices = @transform_2, window_bounds = array<i64: 256, 256>}, {pipeline_mode = #tpu.pipeline_mode<synchronous>, transform_indices = @transform_3, window_bounds = array<i64: 32, 32>}, {transform_indices = @transform_4, window_bounds = array<i64: 8, 32>}]} {
    %c0 = arith.constant 0 : index
    %c0_0 = arith.constant 0 : index
    %c0_1 = arith.constant 0 : index
    %0 = vector.load %arg1[%c0, %c0_0, %c0_1] : memref<1x256x32xf32, #tpu.memory_space<vmem>>, vector<1x256x32xf32>
    %1 = vector.shape_cast %0 : vector<1x256x32xf32> to vector<256x32xf32>
    %c0_2 = arith.constant 0 : index
    %c0_3 = arith.constant 0 : index
    %c0_4 = arith.constant 0 : index
    %2 = vector.load %arg2[%c0_2, %c0_3, %c0_4] : memref<1x256x32xf32, #tpu.memory_space<vmem>>, vector<1x256x32xf32>
    %3 = vector.shape_cast %2 : vector<1x256x32xf32> to vector<256x32xf32>
    %c0_5 = arith.constant 0 : index
    %c0_6 = arith.constant 0 : index
    %4 = vector.load %arg3[%c0_5, %c0_6] : memref<256x256xbf16, #tpu.memory_space<vmem>>, vector<256x256xbf16>
    %5 = arith.extf %4 : vector<256x256xbf16> to vector<256x256xf32>
    %c0_7 = arith.constant 0 : index
    %c0_8 = arith.constant 0 : index
    %6 = vector.load %arg4[%c0_7, %c0_8] : memref<32x32xbf16, #tpu.memory_space<vmem>>, vector<32x32xbf16>
    %7 = arith.extf %6 : vector<32x32xbf16> to vector<32x32xf32>
    %8 = arith.mulf %1, %1 : vector<256x32xf32>
    %9 = arith.mulf %3, %3 : vector<256x32xf32>
    %10 = arith.mulf %1, %3 : vector<256x32xf32>
    %11 = tpu.concatenate %1, %3, %8, %9, %10 in 1 : vector<256x32xf32>, vector<256x32xf32>, vector<256x32xf32>, vector<256x32xf32>, vector<256x32xf32> -> vector<256x160xf32>
    %cst = arith.constant dense<0.000000e+00> : vector<256x160xf32>
    %12 = tpu.matmul %5, %11, %cst {dimension_numbers = #tpu.dot_dimension_numbers<[1], [0], [0], [1], [0, 0, 1, 1], [], []>} : vector<256x256xf32>, vector<256x160xf32>, vector<256x160xf32> -> vector<256x160xf32>
    %13 = vector.extract_strided_slice %12 {offsets = [0, 0], sizes = [256, 32], strides = [1, 1]} : vector<256x160xf32> to vector<256x32xf32>
    %14 = vector.extract_strided_slice %12 {offsets = [0, 32], sizes = [256, 32], strides = [1, 1]} : vector<256x160xf32> to vector<256x32xf32>
    %15 = vector.extract_strided_slice %12 {offsets = [0, 64], sizes = [256, 32], strides = [1, 1]} : vector<256x160xf32> to vector<256x32xf32>
    %16 = vector.extract_strided_slice %12 {offsets = [0, 96], sizes = [256, 32], strides = [1, 1]} : vector<256x160xf32> to vector<256x32xf32>
    %17 = vector.extract_strided_slice %12 {offsets = [0, 128], sizes = [256, 32], strides = [1, 1]} : vector<256x160xf32> to vector<256x32xf32>
    %18 = tpu.concatenate %13, %14, %15, %16, %17 in 0 : vector<256x32xf32>, vector<256x32xf32>, vector<256x32xf32>, vector<256x32xf32>, vector<256x32xf32> -> vector<1280x32xf32>
    %cst_9 = arith.constant dense<0.000000e+00> : vector<1280x32xf32>
    %19 = tpu.matmul %18, %7, %cst_9 {dimension_numbers = #tpu.dot_dimension_numbers<[1], [0], [0], [1], [0, 0, 1, 1], [], []>} : vector<1280x32xf32>, vector<32x32xf32>, vector<1280x32xf32> -> vector<1280x32xf32>
    %20 = vector.extract_strided_slice %19 {offsets = [0, 0], sizes = [256, 32], strides = [1, 1]} : vector<1280x32xf32> to vector<256x32xf32>
    %21 = vector.extract_strided_slice %19 {offsets = [256, 0], sizes = [256, 32], strides = [1, 1]} : vector<1280x32xf32> to vector<256x32xf32>
    %22 = vector.extract_strided_slice %19 {offsets = [512, 0], sizes = [256, 32], strides = [1, 1]} : vector<1280x32xf32> to vector<256x32xf32>
    %23 = vector.extract_strided_slice %19 {offsets = [768, 0], sizes = [256, 32], strides = [1, 1]} : vector<1280x32xf32> to vector<256x32xf32>
    %24 = vector.extract_strided_slice %19 {offsets = [1024, 0], sizes = [256, 32], strides = [1, 1]} : vector<1280x32xf32> to vector<256x32xf32>
    %25 = arith.mulf %20, %20 : vector<256x32xf32>
    %26 = arith.mulf %21, %21 : vector<256x32xf32>
    %27 = arith.mulf %20, %21 : vector<256x32xf32>
    %28 = arith.subf %22, %25 : vector<256x32xf32>
    %29 = arith.subf %23, %26 : vector<256x32xf32>
    %30 = arith.subf %24, %27 : vector<256x32xf32>
    %cst_10 = arith.constant 2.000000e+00 : f32
    %31 = vector.broadcast %cst_10 : f32 to vector<256x32xf32>
    %32 = arith.mulf %31, %27 : vector<256x32xf32>
    %cst_11 = arith.constant 9.99999974E-5 : f32
    %33 = vector.broadcast %cst_11 : f32 to vector<256x32xf32>
    %34 = arith.addf %32, %33 : vector<256x32xf32>
    %cst_12 = arith.constant 2.000000e+00 : f32
    %35 = vector.broadcast %cst_12 : f32 to vector<256x32xf32>
    %36 = arith.mulf %35, %30 : vector<256x32xf32>
    %cst_13 = arith.constant 8.99999984E-4 : f32
    %37 = vector.broadcast %cst_13 : f32 to vector<256x32xf32>
    %38 = arith.addf %36, %37 : vector<256x32xf32>
    %39 = arith.mulf %34, %38 : vector<256x32xf32>
    %40 = arith.addf %25, %26 : vector<256x32xf32>
    %cst_14 = arith.constant 9.99999974E-5 : f32
    %41 = vector.broadcast %cst_14 : f32 to vector<256x32xf32>
    %42 = arith.addf %40, %41 : vector<256x32xf32>
    %43 = arith.addf %28, %29 : vector<256x32xf32>
    %cst_15 = arith.constant 8.99999984E-4 : f32
    %44 = vector.broadcast %cst_15 : f32 to vector<256x32xf32>
    %45 = arith.addf %43, %44 : vector<256x32xf32>
    %46 = arith.mulf %42, %45 : vector<256x32xf32>
    %47 = tpu.reciprocal %46 {approx = true} : vector<256x32xf32> -> vector<256x32xf32>
    %48 = arith.mulf %39, %47 : vector<256x32xf32>
    %cst_16 = arith.constant dense<0.000000e+00> : vector<32xf32>
    %49 = vector.multi_reduction <add>, %48, %cst_16 [0] : vector<256x32xf32> to vector<32xf32>
    %50 = vector.shape_cast %49 : vector<32xf32> to vector<1x32xf32>
    %cst_17 = arith.constant 0.000000e+00 : f32
    %51 = vector.broadcast %cst_17 : f32 to vector<7x32xf32>
    %52 = tpu.concatenate %50, %51 in 0 : vector<1x32xf32>, vector<7x32xf32> -> vector<8x32xf32>
    %c0_18 = arith.constant 0 : index
    %c0_19 = arith.constant 0 : index
    %53 = vector.load %arg5[%c0_18, %c0_19] : memref<8x32xf32, #tpu.memory_space<vmem>>, vector<8x32xf32>
    tpu.vector_store %arg5[%c0_18, %c0_19], %52 {strides = array<i32>} : memref<8x32xf32, #tpu.memory_space<vmem>>, vector<8x32xf32>,
    return
  }
  func.func @transform_0(%arg0: i32) -> (i32, i32, i32) {
    %c0_i32 = arith.constant 0 : i32
    %c0_i32_0 = arith.constant 0 : i32
    %c0_i32_1 = arith.constant 0 : i32
    return %arg0, %c0_i32, %c0_i32_0 : i32, i32, i32
  }
  func.func @transform_1(%arg0: i32) -> (i32, i32, i32) {
    %c0_i32 = arith.constant 0 : i32
    %c0_i32_0 = arith.constant 0 : i32
    %c0_i32_1 = arith.constant 0 : i32
    return %arg0, %c0_i32, %c0_i32_0 : i32, i32, i32
  }
  func.func @transform_2(%arg0: i32) -> (i32, i32) {
    %c0_i32 = arith.constant 0 : i32
    %c0_i32_0 = arith.constant 0 : i32
    %c0_i32_1 = arith.constant 0 : i32
    return %c0_i32, %c0_i32_0 : i32, i32
  }
  func.func @transform_3(%arg0: i32) -> (i32, i32) {
    %c0_i32 = arith.constant 0 : i32
    %c0_i32_0 = arith.constant 0 : i32
    %c0_i32_1 = arith.constant 0 : i32
    return %c0_i32, %c0_i32_0 : i32, i32
  }
  func.func @transform_4(%arg0: i32) -> (i32, i32) {
    %c0_i32 = arith.constant 0 : i32
    %c0_i32_0 = arith.constant 0 : i32
    return %arg0, %c0_i32 : i32, i32
  }
}

</mosaic_0001>

<llo_original>
// kernel: ssim3d_loss.1
$region0: #{ssim3d_loss.1}
  #allocation0 [shape = 'u32[]', space=smem, size = 0x4, offset = 0x4, fixed_abs, tag = 'smem constant byte address 0x4 - core index']
  #allocation1 [shape = 'u32[144,128]{1,0:T(1,128)}', space=vmem, size = 0x12000, scoped, tag = 'internal scratch']
  %s0 = inlined_call_operand.vmem [shape: f32[2,256,32], index: 0, kind: input, shape index: {}]
  %s1 = inlined_call_operand.vmem [shape: f32[2,256,32], index: 1, kind: input, shape index: {}]
  %s2 = inlined_call_operand.vmem [shape: bf16[256,256], index: 2, kind: input, shape index: {}]
  %s3 = inlined_call_operand.vmem [shape: bf16[32,32], index: 3, kind: input, shape index: {}]
  %s4 = inlined_call_operand.vmem [shape: f32[16,32], index: 4, kind: output, shape index: {}]
  %s5 = sld [smem:[#allocation0]]
  $region49: #{ssim3d_loss.1} parent=0
    _
  %s7 = ssub.s32 1, %s5
  %s8 = scalar_select 0, %s7, %s5
  loop: start=0, step=1, limit=4
  $region2: #{ssim3d_loss.1} parent=0 // loop_pre_header
    _
  $region3: #{ssim3d_loss.1} parent=0 // loop_header
    %s10 = sphi 0, %s14
    %p11 = scmp.ge.s32.totalorder %s10, 4
    %s20 = sphi 0, %s22
    %s23 = sphi 0, %s20
    %s24 = sphi 0, %s23
    %s40 = sphi 0, %s24
    %s46 = sphi 0, %s48
    %s49 = sphi 0, %s46
    %s50 = sphi 0, %s49
    %s66 = sphi 0, %s50
    %s70 = sphi 0, %s70
    %s72 = sphi 0, %s70
    %s73 = sphi 0, %s72
    %s87 = sphi 0, %s73
    %s91 = sphi 0, %s91
    %s93 = sphi 0, %s91
    %s94 = sphi 0, %s93
    %s108 = sphi 0, %s94
    %s114 = sphi 0, %s116
    %s117 = sphi 0, %s114
    %s118 = sphi 0, %s117
    %s134 = sphi 0, %s118
  $region4: #{ssim3d_loss.1} parent=0 // loop_header_branch
    %13 = sbr.rel (%p11) target = $region8
  $region5: #{ssim3d_loss.1} parent=0 // loop_body
    %s15 = ssub.s32 %s10, 1
    %s16 = ssub.s32 %s10, 2
    %s17 = sadd.s32 %s10, 1
    %s18 = ssub.s32 %s10, %s17
    %p19 = scmp.eq.s32.totalorder %s18, 0
    %s21 = sadd.s32 %s20, 1
    %s22 = scalar_select %p19, %s20, %s21
    %p25 = pneg %p19
    %p26 = scmp.eq.s32.totalorder %s10, 1
    %p27 = por %p25, %p26
    %p28 = scmp.ne.s32.totalorder %s20, %s23
    %p29 = scmp.eq.s32.totalorder %s10, 0
    %p30 = por %p28, %p29
    %p31 = scmp.ne.s32.totalorder %s20, %s23
    %p32 = scmp.eq.s32.totalorder %s15, 1
    %p33 = por %p31, %p32
    %p34 = scmp.ne.s32.totalorder %s23, %s24
    %p35 = scmp.eq.s32.totalorder %s15, 0
    %p36 = por %p34, %p35
    %p37 = scmp.ne.s32.totalorder %s23, %s24
    %p38 = scmp.eq.s32.totalorder %s16, 1
    %p39 = por %p37, %p38
    %p41 = scmp.ne.s32.totalorder %s24, %s40
    %p42 = scmp.eq.s32.totalorder %s16, 0
    %p43 = por %p41, %p42
    %s44 = ssub.s32 %s10, %s17
    %p45 = scmp.eq.s32.totalorder %s44, 0
    %s47 = sadd.s32 %s46, 1
    %s48 = scalar_select %p45, %s46, %s47
    %p51 = pneg %p45
    %p52 = scmp.eq.s32.totalorder %s10, 1
    %p53 = por %p51, %p52
    %p54 = scmp.ne.s32.totalorder %s46, %s49
    %p55 = scmp.eq.s32.totalorder %s10, 0
    %p56 = por %p54, %p55
    %p57 = scmp.ne.s32.totalorder %s46, %s49
    %p58 = scmp.eq.s32.totalorder %s15, 1
    %p59 = por %p57, %p58
    %p60 = scmp.ne.s32.totalorder %s49, %s50
    %p61 = scmp.eq.s32.totalorder %s15, 0
    %p62 = por %p60, %p61
    %p63 = scmp.ne.s32.totalorder %s49, %s50
    %p64 = scmp.eq.s32.totalorder %s16, 1
    %p65 = por %p63, %p64
    %p67 = scmp.ne.s32.totalorder %s50, %s66
    %p68 = scmp.eq.s32.totalorder %s16, 0
    %p69 = por %p67, %p68
    %s71 = sadd.s32 %s70, 1
    %p74 = scmp.eq.s32.totalorder %s10, 1
    %p75 = scmp.ne.s32.totalorder %s70, %s72
    %p76 = scmp.eq.s32.totalorder %s10, 0
    %p77 = por %p75, %p76
    %p78 = scmp.ne.s32.totalorder %s70, %s72
    %p79 = scmp.eq.s32.totalorder %s15, 1
    %p80 = por %p78, %p79
    %p81 = scmp.ne.s32.totalorder %s72, %s73
    %p82 = scmp.eq.s32.totalorder %s15, 0
    %p83 = por %p81, %p82
    %p84 = scmp.ne.s32.totalorder %s72, %s73
    %p85 = scmp.eq.s32.totalorder %s16, 1
    %p86 = por %p84, %p85
    %p88 = scmp.ne.s32.totalorder %s73, %s87
    %p89 = scmp.eq.s32.totalorder %s16, 0
    %p90 = por %p88, %p89
    %s92 = sadd.s32 %s91, 1
    %p95 = scmp.eq.s32.totalorder %s10, 1
    %p96 = scmp.ne.s32.totalorder %s91, %s93
    %p97 = scmp.eq.s32.totalorder %s10, 0
    %p98 = por %p96, %p97
    %p99 = scmp.ne.s32.totalorder %s91, %s93
    %p100 = scmp.eq.s32.totalorder %s15, 1
    %p101 = por %p99, %p100
    %p102 = scmp.ne.s32.totalorder %s93, %s94
    %p103 = scmp.eq.s32.totalorder %s15, 0
    %p104 = por %p102, %p103
    %p105 = scmp.ne.s32.totalorder %s93, %s94
    %p106 = scmp.eq.s32.totalorder %s16, 1
    %p107 = por %p105, %p106
    %p109 = scmp.ne.s32.totalorder %s94, %s108
    %p110 = scmp.eq.s32.totalorder %s16, 0
    %p111 = por %p109, %p110
    %s112 = ssub.s32 %s10, %s17
    %p113 = scmp.eq.s32.totalorder %s112, 0
    %s115 = sadd.s32 %s114, 1
    %s116 = scalar_select %p113, %s114, %s115
    %p119 = pneg %p113
    %p120 = scmp.eq.s32.totalorder %s10, 1
    %p121 = por %p119, %p120
    %p122 = scmp.ne.s32.totalorder %s114, %s117
    %p123 = scmp.eq.s32.totalorder %s10, 0
    %p124 = por %p122, %p123
    %p125 = scmp.ne.s32.totalorder %s114, %s117
    %p126 = scmp.eq.s32.totalorder %s15, 1
    %p127 = por %p125, %p126
    %p128 = scmp.ne.s32.totalorder %s117, %s118
    %p129 = scmp.eq.s32.totalorder %s15, 0
    %p130 = por %p128, %p129
    %p131 = scmp.ne.s32.totalorder %s117, %s118
    %p132 = scmp.eq.s32.totalorder %s16, 1
    %p133 = por %p131, %p132
    %p135 = scmp.ne.s32.totalorder %s118, %s134
    %p136 = scmp.eq.s32.totalorder %s16, 0
    %p137 = por %p135, %p136
    %p138 = scmp.le.s32.totalorder 1, %s10
    %p139 = scmp.lt.s32.totalorder %s10, 3
    %p140 = pnand %p138, %p139
    %p141 = pneg %p140
    // Predicated region
    $region9: #{ssim3d_loss.1} parent=5 // pred_check
      _
    $region10: #{ssim3d_loss.1} parent=5 // pred_check_branch
      %143 = sbr.rel (%p140) target = $region12
    $region11: #{ssim3d_loss.1} parent=5 // pred_region
      %s144 = ssub.s32 %s10, 1
      // Predicated region
      $region13: #{ssim3d_loss.1} parent=11 // pred_check
        %p145 = pneg %p83
      $region14: #{ssim3d_loss.1} parent=11 // pred_check_branch
        %147 = sbr.rel (%p145) target = $region16
      $region15: #{ssim3d_loss.1} parent=11 // pred_region
        _
      $region16: #{ssim3d_loss.1} parent=11 // pred_fallthru
        _
      // Predicated region
      $region17: #{ssim3d_loss.1} parent=11 // pred_check
        %p148 = pneg %p104
      $region18: #{ssim3d_loss.1} parent=11 // pred_check_branch
        %150 = sbr.rel (%p148) target = $region20
      $region19: #{ssim3d_loss.1} parent=11 // pred_region
        _
      $region20: #{ssim3d_loss.1} parent=11 // pred_fallthru
        _
    $region12: #{ssim3d_loss.1} parent=5 // pred_fallthru
      _
    %p151 = scmp.lt.s32.totalorder %s10, 2
    // Predicated region
    $region21: #{ssim3d_loss.1} parent=5 // pred_check
      %p152 = pneg %p151
    $region22: #{ssim3d_loss.1} parent=5 // pred_check_branch
      %154 = sbr.rel (%p152) target = $region24
    $region23: #{ssim3d_loss.1} parent=5 // pred_region
      // Predicated region
      $region25: #{ssim3d_loss.1} parent=23 // pred_check
        %p155 = pneg %p30
      $region26: #{ssim3d_loss.1} parent=23 // pred_check_branch
        %157 = sbr.rel (%p155) target = $region28
      $region27: #{ssim3d_loss.1} parent=23 // pred_region
        %p158 = scmp.lt.s32.totalorder %s10, 1
        %s159 = scalar_select %p158, %s10, 1
        %s160 = smul.addr %s159, 32
        %s161 = smul.addr %s160, 8
        %s162 = scalar_lea.vmem %s0, %s161
      $region28: #{ssim3d_loss.1} parent=23 // pred_fallthru
        _
      // Predicated region
      $region29: #{ssim3d_loss.1} parent=23 // pred_check
        %p163 = pneg %p56
      $region30: #{ssim3d_loss.1} parent=23 // pred_check_branch
        %165 = sbr.rel (%p163) target = $region32
      $region31: #{ssim3d_loss.1} parent=23 // pred_region
        %p166 = scmp.lt.s32.totalorder %s10, 1
        %s167 = scalar_select %p166, %s10, 1
        %s168 = smul.addr %s167, 32
        %s169 = smul.addr %s168, 8
        %s170 = scalar_lea.vmem %s1, %s169
      $region32: #{ssim3d_loss.1} parent=23 // pred_fallthru
        _
    $region24: #{ssim3d_loss.1} parent=5 // pred_fallthru
      _
    %p171 = scmp.le.s32.totalorder 1, %s10
    %p172 = scmp.lt.s32.totalorder %s10, 3
    %p173 = pnand %p171, %p172
    %p174 = pneg %p173
    // Predicated region
    $region33: #{ssim3d_loss.1} parent=5 // pred_check
      _
    $region34: #{ssim3d_loss.1} parent=5 // pred_check_branch
      %176 = sbr.rel (%p173) target = $region36
    $region35: #{ssim3d_loss.1} parent=5 // pred_region
      %s177 = ssub.s32 %s10, 1
      %p178 = scmp.lt.s32.totalorder %s15, 1
      %s179 = scalar_select %p178, %s15, 1
      %s180 = smul.addr %s179, 32
      %s181 = smul.addr %s180, 8
      %s182 = scalar_lea.vmem %s0, %s181
      %p183 = pneg %p36
      %p184 = pneg %p33
      %p185 = scmp.lt.s32.totalorder %s15, 1
      %s186 = scalar_select %p185, %s15, 1
      %s187 = smul.addr %s186, 32
      %s188 = smul.addr %s187, 8
      %s189 = scalar_lea.vmem %s1, %s188
      %p190 = pneg %p62
      %p191 = pneg %p59
      %p192 = pneg %p83
      %p193 = pneg %p80
      %p194 = pneg %p104
      %p195 = pneg %p101
      %p196 = pneg %p130
      %p197 = pneg %p127
      %p198 = scmp.lt.s32.totalorder %s15, 1
      %s199 = scalar_select %p198, %s15, 1
      %s200 = smul.addr %s199, 8
      %s201 = scalar_lea.vmem %s4, %s200
      %p202 = scmp.lt.s32.totalorder %s15, 1
      %s203 = scalar_select %p202, %s15, 1
      %s204 = smul.addr %s203, 32
      %s205 = smul.addr %s204, 8
      %s206 = scalar_lea.vmem %s0, %s205
      %p207 = scmp.lt.s32.totalorder %s15, 1
      %s208 = scalar_select %p207, %s15, 1
      %s209 = smul.addr %s208, 32
      %s210 = smul.addr %s209, 8
      %s211 = scalar_lea.vmem %s1, %s210
      %p212 = scmp.lt.s32.totalorder %s15, 1
      %s213 = scalar_select %p212, %s15, 1
      %s214 = smul.addr %s213, 8
      %s215 = scalar_lea.vmem %s4, %s214
      %v216 = vld [vmem:[%s206] sm:$0xff]
      %v217 = vld [vmem:[%s206 + $0x8] sm:$0xff]
      %v218 = vld [vmem:[%s206 + $0x10] sm:$0xff]
      %v219 = vld [vmem:[%s206 + $0x18] sm:$0xff]
      %v220 = vld [vmem:[%s206 + $0x20] sm:$0xff]
      %v221 = vld [vmem:[%s206 + $0x28] sm:$0xff]
      %v222 = vld [vmem:[%s206 + $0x30] sm:$0xff]
      %v223 = vld [vmem:[%s206 + $0x38] sm:$0xff]
      %v224 = vld [vmem:[%s206 + $0x40] sm:$0xff]
      %v225 = vld [vmem:[%s206 + $0x48] sm:$0xff]
      %v226 = vld [vmem:[%s206 + $0x50] sm:$0xff]
      %v227 = vld [vmem:[%s206 + $0x58] sm:$0xff]
      %v228 = vld [vmem:[%s206 + $0x60] sm:$0xff]
      %v229 = vld [vmem:[%s206 + $0x68] sm:$0xff]
      %v230 = vld [vmem:[%s206 + $0x70] sm:$0xff]
      %v231 = vld [vmem:[%s206 + $0x78] sm:$0xff]
      %v232 = vld [vmem:[%s206 + $0x80] sm:$0xff]
      %v233 = vld [vmem:[%s206 + $0x88] sm:$0xff]
      %v234 = vld [vmem:[%s206 + $0x90] sm:$0xff]
      %v235 = vld [vmem:[%s206 + $0x98] sm:$0xff]
      %v236 = vld [vmem:[%s206 + $0xa0] sm:$0xff]
      %v237 = vld [vmem:[%s206 + $0xa8] sm:$0xff]
      %v238 = vld [vmem:[%s206 + $0xb0] sm:$0xff]
      %v239 = vld [vmem:[%s206 + $0xb8] sm:$0xff]
      %v240 = vld [vmem:[%s206 + $0xc0] sm:$0xff]
      %v241 = vld [vmem:[%s206 + $0xc8] sm:$0xff]
      %v242 = vld [vmem:[%s206 + $0xd0] sm:$0xff]
      %v243 = vld [vmem:[%s206 + $0xd8] sm:$0xff]
      %v244 = vld [vmem:[%s206 + $0xe0] sm:$0xff]
      %v245 = vld [vmem:[%s206 + $0xe8] sm:$0xff]
      %v246 = vld [vmem:[%s206 + $0xf0] sm:$0xff]
      %v247 = vld [vmem:[%s206 + $0xf8] sm:$0xff]
      %v248 = vld [vmem:[%s211] sm:$0xff]
      %v249 = vld [vmem:[%s211 + $0x8] sm:$0xff]
      %v250 = vld [vmem:[%s211 + $0x10] sm:$0xff]
      %v251 = vld [vmem:[%s211 + $0x18] sm:$0xff]
      %v252 = vld [vmem:[%s211 + $0x20] sm:$0xff]
      %v253 = vld [vmem:[%s211 + $0x28] sm:$0xff]
      %v254 = vld [vmem:[%s211 + $0x30] sm:$0xff]
      %v255 = vld [vmem:[%s211 + $0x38] sm:$0xff]
      %v256 = vld [vmem:[%s211 + $0x40] sm:$0xff]
      %v257 = vld [vmem:[%s211 + $0x48] sm:$0xff]
      %v258 = vld [vmem:[%s211 + $0x50] sm:$0xff]
      %v259 = vld [vmem:[%s211 + $0x58] sm:$0xff]
      %v260 = vld [vmem:[%s211 + $0x60] sm:$0xff]
      %v261 = vld [vmem:[%s211 + $0x68] sm:$0xff]
      %v262 = vld [vmem:[%s211 + $0x70] sm:$0xff]
      %v263 = vld [vmem:[%s211 + $0x78] sm:$0xff]
      %v264 = vld [vmem:[%s211 + $0x80] sm:$0xff]
      %v265 = vld [vmem:[%s211 + $0x88] sm:$0xff]
      %v266 = vld [vmem:[%s211 + $0x90] sm:$0xff]
      %v267 = vld [vmem:[%s211 + $0x98] sm:$0xff]
      %v268 = vld [vmem:[%s211 + $0xa0] sm:$0xff]
      %v269 = vld [vmem:[%s211 + $0xa8] sm:$0xff]
      %v270 = vld [vmem:[%s211 + $0xb0] sm:$0xff]
      %v271 = vld [vmem:[%s211 + $0xb8] sm:$0xff]
      %v272 = vld [vmem:[%s211 + $0xc0] sm:$0xff]
      %v273 = vld [vmem:[%s211 + $0xc8] sm:$0xff]
      %v274 = vld [vmem:[%s211 + $0xd0] sm:$0xff]
      %v275 = vld [vmem:[%s211 + $0xd8] sm:$0xff]
      %v276 = vld [vmem:[%s211 + $0xe0] sm:$0xff]
      %v277 = vld [vmem:[%s211 + $0xe8] sm:$0xff]
      %v278 = vld [vmem:[%s211 + $0xf0] sm:$0xff]
      %v279 = vld [vmem:[%s211 + $0xf8] sm:$0xff]
      %v280 = vld [vmem:[%s2] sm:$0xff]
      %v281 = vld [vmem:[%s2 + $0x8] sm:$0xff]
      %v282 = vld [vmem:[%s2 + $0x10] sm:$0xff]
      %v283 = vld [vmem:[%s2 + $0x18] sm:$0xff]
      %v284 = vld [vmem:[%s2 + $0x20] sm:$0xff]
      %v285 = vld [vmem:[%s2 + $0x28] sm:$0xff]
      %v286 = vld [vmem:[%s2 + $0x30] sm:$0xff]
      %v287 = vld [vmem:[%s2 + $0x38] sm:$0xff]
      %v288 = vld [vmem:[%s2 + $0x40] sm:$0xff]
      %v289 = vld [vmem:[%s2 + $0x48] sm:$0xff]
      %v290 = vld [vmem:[%s2 + $0x50] sm:$0xff]
      %v291 = vld [vmem:[%s2 + $0x58] sm:$0xff]
      %v292 = vld [vmem:[%s2 + $0x60] sm:$0xff]
      %v293 = vld [vmem:[%s2 + $0x68] sm:$0xff]
      %v294 = vld [vmem:[%s2 + $0x70] sm:$0xff]
      %v295 = vld [vmem:[%s2 + $0x78] sm:$0xff]
      %v296 = vld [vmem:[%s2 + $0x80] sm:$0xff]
      %v297 = vld [vmem:[%s2 + $0x88] sm:$0xff]
      %v298 = vld [vmem:[%s2 + $0x90] sm:$0xff]
      %v299 = vld [vmem:[%s2 + $0x98] sm:$0xff]
      %v300 = vld [vmem:[%s2 + $0xa0] sm:$0xff]
      %v301 = vld [vmem:[%s2 + $0xa8] sm:$0xff]
      %v302 = vld [vmem:[%s2 + $0xb0] sm:$0xff]
      %v303 = vld [vmem:[%s2 + $0xb8] sm:$0xff]
      %v304 = vld [vmem:[%s2 + $0xc0] sm:$0xff]
      %v305 = vld [vmem:[%s2 + $0xc8] sm:$0xff]
      %v306 = vld [vmem:[%s2 + $0xd0] sm:$0xff]
      %v307 = vld [vmem:[%s2 + $0xd8] sm:$0xff]
      %v308 = vld [vmem:[%s2 + $0xe0] sm:$0xff]
      %v309 = vld [vmem:[%s2 + $0xe8] sm:$0xff]
      %v310 = vld [vmem:[%s2 + $0xf0] sm:$0xff]
      %v311 = vld [vmem:[%s2 + $0xf8] sm:$0xff]
      %v312 = vunpack.c.l.bf16 %v280
      %v313 = vunpack.c.h.bf16 %v280
      %v314 = vunpack.c.l.bf16 %v281
      %v315 = vunpack.c.h.bf16 %v281
      %v316 = vunpack.c.l.bf16 %v282
      %v317 = vunpack.c.h.bf16 %v282
      %v318 = vunpack.c.l.bf16 %v283
      %v319 = vunpack.c.h.bf16 %v283
      %v320 = vunpack.c.l.bf16 %v284
      %v321 = vunpack.c.h.bf16 %v284
      %v322 = vunpack.c.l.bf16 %v285
      %v323 = vunpack.c.h.bf16 %v285
      %v324 = vunpack.c.l.bf16 %v286
      %v325 = vunpack.c.h.bf16 %v286
      %v326 = vunpack.c.l.bf16 %v287
      %v327 = vunpack.c.h.bf16 %v287
      %v328 = vunpack.c.l.bf16 %v288
      %v329 = vunpack.c.h.bf16 %v288
      %v330 = vunpack.c.l.bf16 %v289
      %v331 = vunpack.c.h.bf16 %v289
      %v332 = vunpack.c.l.bf16 %v290
      %v333 = vunpack.c.h.bf16 %v290
      %v334 = vunpack.c.l.bf16 %v291
      %v335 = vunpack.c.h.bf16 %v291
      %v336 = vunpack.c.l.bf16 %v292
      %v337 = vunpack.c.h.bf16 %v292
      %v338 = vunpack.c.l.bf16 %v293
      %v339 = vunpack.c.h.bf16 %v293
      %v340 = vunpack.c.l.bf16 %v294
      %v341 = vunpack.c.h.bf16 %v294
      %v342 = vunpack.c.l.bf16 %v295
      %v343 = vunpack.c.h.bf16 %v295
      %v344 = vunpack.c.l.bf16 %v296
      %v345 = vunpack.c.h.bf16 %v296
      %v346 = vunpack.c.l.bf16 %v297
      %v347 = vunpack.c.h.bf16 %v297
      %v348 = vunpack.c.l.bf16 %v298
      %v349 = vunpack.c.h.bf16 %v298
      %v350 = vunpack.c.l.bf16 %v299
      %v351 = vunpack.c.h.bf16 %v299
      %v352 = vunpack.c.l.bf16 %v300
      %v353 = vunpack.c.h.bf16 %v300
      %v354 = vunpack.c.l.bf16 %v301
      %v355 = vunpack.c.h.bf16 %v301
      %v356 = vunpack.c.l.bf16 %v302
      %v357 = vunpack.c.h.bf16 %v302
      %v358 = vunpack.c.l.bf16 %v303
      %v359 = vunpack.c.h.bf16 %v303
      %v360 = vunpack.c.l.bf16 %v304
      %v361 = vunpack.c.h.bf16 %v304
      %v362 = vunpack.c.l.bf16 %v305
      %v363 = vunpack.c.h.bf16 %v305
      %v364 = vunpack.c.l.bf16 %v306
      %v365 = vunpack.c.h.bf16 %v306
      %v366 = vunpack.c.l.bf16 %v307
      %v367 = vunpack.c.h.bf16 %v307
      %v368 = vunpack.c.l.bf16 %v308
      %v369 = vunpack.c.h.bf16 %v308
      %v370 = vunpack.c.l.bf16 %v309
      %v371 = vunpack.c.h.bf16 %v309
      %v372 = vunpack.c.l.bf16 %v310
      %v373 = vunpack.c.h.bf16 %v310
      %v374 = vunpack.c.l.bf16 %v311
      %v375 = vunpack.c.h.bf16 %v311
      %v376 = vld [vmem:[%s3] sm:$0xf]
      %v377 = vld [vmem:[%s3 + $0x4] sm:$0xf]
      %v378 = vld [vmem:[%s3 + $0x8] sm:$0xf]
      %v379 = vld [vmem:[%s3 + $0xc] sm:$0xf]
      %v380 = vunpack.c.l.bf16 %v376
      %v381 = vunpack.c.l.bf16 %v377
      %v382 = vunpack.c.l.bf16 %v378
      %v383 = vunpack.c.l.bf16 %v379
      %v384 = vmul.f32 %v216, %v216
      %v385 = vmul.f32 %v217, %v217
      %v386 = vmul.f32 %v218, %v218
      %v387 = vmul.f32 %v219, %v219
      %v388 = vmul.f32 %v220, %v220
      %v389 = vmul.f32 %v221, %v221
      %v390 = vmul.f32 %v222, %v222
      %v391 = vmul.f32 %v223, %v223
      %v392 = vmul.f32 %v224, %v224
      %v393 = vmul.f32 %v225, %v225
      %v394 = vmul.f32 %v226, %v226
      %v395 = vmul.f32 %v227, %v227
      %v396 = vmul.f32 %v228, %v228
      %v397 = vmul.f32 %v229, %v229
      %v398 = vmul.f32 %v230, %v230
      %v399 = vmul.f32 %v231, %v231
      %v400 = vmul.f32 %v232, %v232
      %v401 = vmul.f32 %v233, %v233
      %v402 = vmul.f32 %v234, %v234
      %v403 = vmul.f32 %v235, %v235
      %v404 = vmul.f32 %v236, %v236
      %v405 = vmul.f32 %v237, %v237
      %v406 = vmul.f32 %v238, %v238
      %v407 = vmul.f32 %v239, %v239
      %v408 = vmul.f32 %v240, %v240
      %v409 = vmul.f32 %v241, %v241
      %v410 = vmul.f32 %v242, %v242
      %v411 = vmul.f32 %v243, %v243
      %v412 = vmul.f32 %v244, %v244
      %v413 = vmul.f32 %v245, %v245
      %v414 = vmul.f32 %v246, %v246
      %v415 = vmul.f32 %v247, %v247
      %v416 = vmul.f32 %v248, %v248
      %v417 = vmul.f32 %v249, %v249
      %v418 = vmul.f32 %v250, %v250
      %v419 = vmul.f32 %v251, %v251
      %v420 = vmul.f32 %v252, %v252
      %v421 = vmul.f32 %v253, %v253
      %v422 = vmul.f32 %v254, %v254
      %v423 = vmul.f32 %v255, %v255
      %v424 = vmul.f32 %v256, %v256
      %v425 = vmul.f32 %v257, %v257
      %v426 = vmul.f32 %v258, %v258
      %v427 = vmul.f32 %v259, %v259
      %v428 = vmul.f32 %v260, %v260
      %v429 = vmul.f32 %v261, %v261
      %v430 = vmul.f32 %v262, %v262
      %v431 = vmul.f32 %v263, %v263
      %v432 = vmul.f32 %v264, %v264
      %v433 = vmul.f32 %v265, %v265
      %v434 = vmul.f32 %v266, %v266
      %v435 = vmul.f32 %v267, %v267
      %v436 = vmul.f32 %v268, %v268
      %v437 = vmul.f32 %v269, %v269
      %v438 = vmul.f32 %v270, %v270
      %v439 = vmul.f32 %v271, %v271
      %v440 = vmul.f32 %v272, %v272
      %v441 = vmul.f32 %v273, %v273
      %v442 = vmul.f32 %v274, %v274
      %v443 = vmul.f32 %v275, %v275
      %v444 = vmul.f32 %v276, %v276
      %v445 = vmul.f32 %v277, %v277
      %v446 = vmul.f32 %v278, %v278
      %v447 = vmul.f32 %v279, %v279
      %v448 = vmul.f32 %v216, %v248
      %v449 = vmul.f32 %v217, %v249
      %v450 = vmul.f32 %v218, %v250
      %v451 = vmul.f32 %v219, %v251
      %v452 = vmul.f32 %v220, %v252
      %v453 = vmul.f32 %v221, %v253
      %v454 = vmul.f32 %v222, %v254
      %v455 = vmul.f32 %v223, %v255
      %v456 = vmul.f32 %v224, %v256
      %v457 = vmul.f32 %v225, %v257
      %v458 = vmul.f32 %v226, %v258
      %v459 = vmul.f32 %v227, %v259
      %v460 = vmul.f32 %v228, %v260
      %v461 = vmul.f32 %v229, %v261
      %v462 = vmul.f32 %v230, %v262
      %v463 = vmul.f32 %v231, %v263
      %v464 = vmul.f32 %v232, %v264
      %v465 = vmul.f32 %v233, %v265
      %v466 = vmul.f32 %v234, %v266
      %v467 = vmul.f32 %v235, %v267
      %v468 = vmul.f32 %v236, %v268
      %v469 = vmul.f32 %v237, %v269
      %v470 = vmul.f32 %v238, %v270
      %v471 = vmul.f32 %v239, %v271
      %v472 = vmul.f32 %v240, %v272
      %v473 = vmul.f32 %v241, %v273
      %v474 = vmul.f32 %v242, %v274
      %v475 = vmul.f32 %v243, %v275
      %v476 = vmul.f32 %v244, %v276
      %v477 = vmul.f32 %v245, %v277
      %v478 = vmul.f32 %v246, %v278
      %v479 = vmul.f32 %v247, %v279
      %512 = vrot.lane.b32.xlu0 %v248, 32
      %v513 = vpop.permute.xlu0 %512
      %514 = vrot.lane.b32.xlu0 %v249, 32
      %v515 = vpop.permute.xlu0 %514
      %516 = vrot.lane.b32.xlu0 %v250, 32
      %v517 = vpop.permute.xlu0 %516
      %518 = vrot.lane.b32.xlu0 %v251, 32
      %v519 = vpop.permute.xlu0 %518
      %520 = vrot.lane.b32.xlu0 %v252, 32
      %v521 = vpop.permute.xlu0 %520
      %522 = vrot.lane.b32.xlu0 %v253, 32
      %v523 = vpop.permute.xlu0 %522
      %524 = vrot.lane.b32.xlu0 %v254, 32
      %v525 = vpop.permute.xlu0 %524
      %526 = vrot.lane.b32.xlu0 %v255, 32
      %v527 = vpop.permute.xlu0 %526
      %528 = vrot.lane.b32.xlu0 %v256, 32
      %v529 = vpop.permute.xlu0 %528
      %530 = vrot.lane.b32.xlu0 %v257, 32
      %v531 = vpop.permute.xlu0 %530
      %532 = vrot.lane.b32.xlu0 %v258, 32
      %v533 = vpop.permute.xlu0 %532
      %534 = vrot.lane.b32.xlu0 %v259, 32
      %v535 = vpop.permute.xlu0 %534
      %536 = vrot.lane.b32.xlu0 %v260, 32
      %v537 = vpop.permute.xlu0 %536
      %538 = vrot.lane.b32.xlu0 %v261, 32
      %v539 = vpop.permute.xlu0 %538
      %540 = vrot.lane.b32.xlu0 %v262, 32
      %v541 = vpop.permute.xlu0 %540
      %542 = vrot.lane.b32.xlu0 %v263, 32
      %v543 = vpop.permute.xlu0 %542
      %544 = vrot.lane.b32.xlu0 %v264, 32
      %v545 = vpop.permute.xlu0 %544
      %546 = vrot.lane.b32.xlu0 %v265, 32
      %v547 = vpop.permute.xlu0 %546
      %548 = vrot.lane.b32.xlu0 %v266, 32
      %v549 = vpop.permute.xlu0 %548
      %550 = vrot.lane.b32.xlu0 %v267, 32
      %v551 = vpop.permute.xlu0 %550
      %552 = vrot.lane.b32.xlu0 %v268, 32
      %v553 = vpop.permute.xlu0 %552
      %554 = vrot.lane.b32.xlu0 %v269, 32
      %v555 = vpop.permute.xlu0 %554
      %556 = vrot.lane.b32.xlu0 %v270, 32
      %v557 = vpop.permute.xlu0 %556
      %558 = vrot.lane.b32.xlu0 %v271, 32
      %v559 = vpop.permute.xlu0 %558
      %560 = vrot.lane.b32.xlu0 %v272, 32
      %v561 = vpop.permute.xlu0 %560
      %562 = vrot.lane.b32.xlu0 %v273, 32
      %v563 = vpop.permute.xlu0 %562
      %564 = vrot.lane.b32.xlu0 %v274, 32
      %v565 = vpop.permute.xlu0 %564
      %566 = vrot.lane.b32.xlu0 %v275, 32
      %v567 = vpop.permute.xlu0 %566
      %568 = vrot.lane.b32.xlu0 %v276, 32
      %v569 = vpop.permute.xlu0 %568
      %570 = vrot.lane.b32.xlu0 %v277, 32
      %v571 = vpop.permute.xlu0 %570
      %572 = vrot.lane.b32.xlu0 %v278, 32
      %v573 = vpop.permute.xlu0 %572
      %574 = vrot.lane.b32.xlu0 %v279, 32
      %v575 = vpop.permute.xlu0 %574
      %640 = vrot.lane.b32.xlu0 %v384, 64
      %v641 = vpop.permute.xlu0 %640
      %642 = vrot.lane.b32.xlu0 %v385, 64
      %v643 = vpop.permute.xlu0 %642
      %644 = vrot.lane.b32.xlu0 %v386, 64
      %v645 = vpop.permute.xlu0 %644
      %646 = vrot.lane.b32.xlu0 %v387, 64
      %v647 = vpop.permute.xlu0 %646
      %648 = vrot.lane.b32.xlu0 %v388, 64
      %v649 = vpop.permute.xlu0 %648
      %650 = vrot.lane.b32.xlu0 %v389, 64
      %v651 = vpop.permute.xlu0 %650
      %652 = vrot.lane.b32.xlu0 %v390, 64
      %v653 = vpop.permute.xlu0 %652
      %654 = vrot.lane.b32.xlu0 %v391, 64
      %v655 = vpop.permute.xlu0 %654
      %656 = vrot.lane.b32.xlu0 %v392, 64
      %v657 = vpop.permute.xlu0 %656
      %658 = vrot.lane.b32.xlu0 %v393, 64
      %v659 = vpop.permute.xlu0 %658
      %660 = vrot.lane.b32.xlu0 %v394, 64
      %v661 = vpop.permute.xlu0 %660
      %662 = vrot.lane.b32.xlu0 %v395, 64
      %v663 = vpop.permute.xlu0 %662
      %664 = vrot.lane.b32.xlu0 %v396, 64
      %v665 = vpop.permute.xlu0 %664
      %666 = vrot.lane.b32.xlu0 %v397, 64
      %v667 = vpop.permute.xlu0 %666
      %668 = vrot.lane.b32.xlu0 %v398, 64
      %v669 = vpop.permute.xlu0 %668
      %670 = vrot.lane.b32.xlu0 %v399, 64
      %v671 = vpop.permute.xlu0 %670
      %672 = vrot.lane.b32.xlu0 %v400, 64
      %v673 = vpop.permute.xlu0 %672
      %674 = vrot.lane.b32.xlu0 %v401, 64
      %v675 = vpop.permute.xlu0 %674
      %676 = vrot.lane.b32.xlu0 %v402, 64
      %v677 = vpop.permute.xlu0 %676
      %678 = vrot.lane.b32.xlu0 %v403, 64
      %v679 = vpop.permute.xlu0 %678
      %680 = vrot.lane.b32.xlu0 %v404, 64
      %v681 = vpop.permute.xlu0 %680
      %682 = vrot.lane.b32.xlu0 %v405, 64
      %v683 = vpop.permute.xlu0 %682
      %684 = vrot.lane.b32.xlu0 %v406, 64
      %v685 = vpop.permute.xlu0 %684
      %686 = vrot.lane.b32.xlu0 %v407, 64
      %v687 = vpop.permute.xlu0 %686
      %688 = vrot.lane.b32.xlu0 %v408, 64
      %v689 = vpop.permute.xlu0 %688
      %690 = vrot.lane.b32.xlu0 %v409, 64
      %v691 = vpop.permute.xlu0 %690
      %692 = vrot.lane.b32.xlu0 %v410, 64
      %v693 = vpop.permute.xlu0 %692
      %694 = vrot.lane.b32.xlu0 %v411, 64
      %v695 = vpop.permute.xlu0 %694
      %696 = vrot.lane.b32.xlu0 %v412, 64
      %v697 = vpop.permute.xlu0 %696
      %698 = vrot.lane.b32.xlu0 %v413, 64
      %v699 = vpop.permute.xlu0 %698
      %700 = vrot.lane.b32.xlu0 %v414, 64
      %v701 = vpop.permute.xlu0 %700
      %702 = vrot.lane.b32.xlu0 %v415, 64
      %v703 = vpop.permute.xlu0 %702
      %768 = vrot.lane.b32.xlu0 %v416, 96
      %v769 = vpop.permute.xlu0 %768
      %770 = vrot.lane.b32.xlu0 %v417, 96
      %v771 = vpop.permute.xlu0 %770
      %772 = vrot.lane.b32.xlu0 %v418, 96
      %v773 = vpop.permute.xlu0 %772
      %774 = vrot.lane.b32.xlu0 %v419, 96
      %v775 = vpop.permute.xlu0 %774
      %776 = vrot.lane.b32.xlu0 %v420, 96
      %v777 = vpop.permute.xlu0 %776
      %778 = vrot.lane.b32.xlu0 %v421, 96
      %v779 = vpop.permute.xlu0 %778
      %780 = vrot.lane.b32.xlu0 %v422, 96
      %v781 = vpop.permute.xlu0 %780
      %782 = vrot.lane.b32.xlu0 %v423, 96
      %v783 = vpop.permute.xlu0 %782
      %784 = vrot.lane.b32.xlu0 %v424, 96
      %v785 = vpop.permute.xlu0 %784
      %786 = vrot.lane.b32.xlu0 %v425, 96
      %v787 = vpop.permute.xlu0 %786
      %788 = vrot.lane.b32.xlu0 %v426, 96
      %v789 = vpop.permute.xlu0 %788
      %790 = vrot.lane.b32.xlu0 %v427, 96
      %v791 = vpop.permute.xlu0 %790
      %792 = vrot.lane.b32.xlu0 %v428, 96
      %v793 = vpop.permute.xlu0 %792
      %794 = vrot.lane.b32.xlu0 %v429, 96
      %v795 = vpop.permute.xlu0 %794
      %796 = vrot.lane.b32.xlu0 %v430, 96
      %v797 = vpop.permute.xlu0 %796
      %798 = vrot.lane.b32.xlu0 %v431, 96
      %v799 = vpop.permute.xlu0 %798
      %800 = vrot.lane.b32.xlu0 %v432, 96
      %v801 = vpop.permute.xlu0 %800
      %802 = vrot.lane.b32.xlu0 %v433, 96
      %v803 = vpop.permute.xlu0 %802
      %804 = vrot.lane.b32.xlu0 %v434, 96
      %v805 = vpop.permute.xlu0 %804
      %806 = vrot.lane.b32.xlu0 %v435, 96
      %v807 = vpop.permute.xlu0 %806
      %808 = vrot.lane.b32.xlu0 %v436, 96
      %v809 = vpop.permute.xlu0 %808
      %810 = vrot.lane.b32.xlu0 %v437, 96
      %v811 = vpop.permute.xlu0 %810
      %812 = vrot.lane.b32.xlu0 %v438, 96
      %v813 = vpop.permute.xlu0 %812
      %814 = vrot.lane.b32.xlu0 %v439, 96
      %v815 = vpop.permute.xlu0 %814
      %816 = vrot.lane.b32.xlu0 %v440, 96
      %v817 = vpop.permute.xlu0 %816
      %818 = vrot.lane.b32.xlu0 %v441, 96
      %v819 = vpop.permute.xlu0 %818
      %820 = vrot.lane.b32.xlu0 %v442, 96
      %v821 = vpop.permute.xlu0 %820
      %822 = vrot.lane.b32.xlu0 %v443, 96
      %v823 = vpop.permute.xlu0 %822
      %824 = vrot.lane.b32.xlu0 %v444, 96
      %v825 = vpop.permute.xlu0 %824
      %826 = vrot.lane.b32.xlu0 %v445, 96
      %v827 = vpop.permute.xlu0 %826
      %828 = vrot.lane.b32.xlu0 %v446, 96
      %v829 = vpop.permute.xlu0 %828
      %830 = vrot.lane.b32.xlu0 %v447, 96
      %v831 = vpop.permute.xlu0 %830
      %vm864 = vcmask 261120
      %v865 = vsel %vm864, %v216, %v513
      %v866 = vsel %vm864, %v217, %v515
      %v867 = vsel %vm864, %v218, %v517
      %v868 = vsel %vm864, %v219, %v519
      %v869 = vsel %vm864, %v220, %v521
      %v870 = vsel %vm864, %v221, %v523
      %v871 = vsel %vm864, %v222, %v525
      %v872 = vsel %vm864, %v223, %v527
      %v873 = vsel %vm864, %v224, %v529
      %v874 = vsel %vm864, %v225, %v531
      %v875 = vsel %vm864, %v226, %v533
      %v876 = vsel %vm864, %v227, %v535
      %v877 = vsel %vm864, %v228, %v537
      %v878 = vsel %vm864, %v229, %v539
      %v879 = vsel %vm864, %v230, %v541
      %v880 = vsel %vm864, %v231, %v543
      %v881 = vsel %vm864, %v232, %v545
      %v882 = vsel %vm864, %v233, %v547
      %v883 = vsel %vm864, %v234, %v549
      %v884 = vsel %vm864, %v235, %v551
      %v885 = vsel %vm864, %v236, %v553
      %v886 = vsel %vm864, %v237, %v555
      %v887 = vsel %vm864, %v238, %v557
      %v888 = vsel %vm864, %v239, %v559
      %v889 = vsel %vm864, %v240, %v561
      %v890 = vsel %vm864, %v241, %v563
      %v891 = vsel %vm864, %v242, %v565
      %v892 = vsel %vm864, %v243, %v567
      %v893 = vsel %vm864, %v244, %v569
      %v894 = vsel %vm864, %v245, %v571
      %v895 = vsel %vm864, %v246, %v573
      %v896 = vsel %vm864, %v247, %v575
      %vm897 = vcmask 523264
      %v898 = vsel %vm897, %v865, %v641
      %v899 = vsel %vm897, %v866, %v643
      %v900 = vsel %vm897, %v867, %v645
      %v901 = vsel %vm897, %v868, %v647
      %v902 = vsel %vm897, %v869, %v649
      %v903 = vsel %vm897, %v870, %v651
      %v904 = vsel %vm897, %v871, %v653
      %v905 = vsel %vm897, %v872, %v655
      %v906 = vsel %vm897, %v873, %v657
      %v907 = vsel %vm897, %v874, %v659
      %v908 = vsel %vm897, %v875, %v661
      %v909 = vsel %vm897, %v876, %v663
      %v910 = vsel %vm897, %v877, %v665
      %v911 = vsel %vm897, %v878, %v667
      %v912 = vsel %vm897, %v879, %v669
      %v913 = vsel %vm897, %v880, %v671
      %v914 = vsel %vm897, %v881, %v673
      %v915 = vsel %vm897, %v882, %v675
      %v916 = vsel %vm897, %v883, %v677
      %v917 = vsel %vm897, %v884, %v679
      %v918 = vsel %vm897, %v885, %v681
      %v919 = vsel %vm897, %v886, %v683
      %v920 = vsel %vm897, %v887, %v685
      %v921 = vsel %vm897, %v888, %v687
      %v922 = vsel %vm897, %v889, %v689
      %v923 = vsel %vm897, %v890, %v691
      %v924 = vsel %vm897, %v891, %v693
      %v925 = vsel %vm897, %v892, %v695
      %v926 = vsel %vm897, %v893, %v697
      %v927 = vsel %vm897, %v894, %v699
      %v928 = vsel %vm897, %v895, %v701
      %v929 = vsel %vm897, %v896, %v703
      %vm930 = vcmask 785408
      %v931 = vsel %vm930, %v898, %v769
      %v932 = vsel %vm930, %v899, %v771
      %v933 = vsel %vm930, %v900, %v773
      %v934 = vsel %vm930, %v901, %v775
      %v935 = vsel %vm930, %v902, %v777
      %v936 = vsel %vm930, %v903, %v779
      %v937 = vsel %vm930, %v904, %v781
      %v938 = vsel %vm930, %v905, %v783
      %v939 = vsel %vm930, %v906, %v785
      %v940 = vsel %vm930, %v907, %v787
      %v941 = vsel %vm930, %v908, %v789
      %v942 = vsel %vm930, %v909, %v791
      %v943 = vsel %vm930, %v910, %v793
      %v944 = vsel %vm930, %v911, %v795
      %v945 = vsel %vm930, %v912, %v797
      %v946 = vsel %vm930, %v913, %v799
      %v947 = vsel %vm930, %v914, %v801
      %v948 = vsel %vm930, %v915, %v803
      %v949 = vsel %vm930, %v916, %v805
      %v950 = vsel %vm930, %v917, %v807
      %v951 = vsel %vm930, %v918, %v809
      %v952 = vsel %vm930, %v919, %v811
      %v953 = vsel %vm930, %v920, %v813
      %v954 = vsel %vm930, %v921, %v815
      %v955 = vsel %vm930, %v922, %v817
      %v956 = vsel %vm930, %v923, %v819
      %v957 = vsel %vm930, %v924, %v821
      %v958 = vsel %vm930, %v925, %v823
      %v959 = vsel %vm930, %v926, %v825
      %v960 = vsel %vm930, %v927, %v827
      %v961 = vsel %vm930, %v928, %v829
      %v962 = vsel %vm930, %v929, %v831
      %963 = vmatprep.subr.mxu0 %v448
      %964 = vmatpush1.msra.mxu0 %v931
      %965 = vmatprep.subr.mxu0 %v449
      %966 = vmatpush1.msra.mxu0 %v932
      %967 = vmatprep.subr.mxu0 %v450
      %968 = vmatpush1.msra.mxu0 %v933
      %969 = vmatprep.subr.mxu0 %v451
      %970 = vmatpush1.msra.mxu0 %v934
      %971 = vmatprep.subr.mxu0 %v452
      %972 = vmatpush1.msra.mxu0 %v935
      %973 = vmatprep.subr.mxu0 %v453
      %974 = vmatpush1.msra.mxu0 %v936
      %975 = vmatprep.subr.mxu0 %v454
      %976 = vmatpush1.msra.mxu0 %v937
      %977 = vmatprep.subr.mxu0 %v455
      %978 = vmatpush1.msra.mxu0 %v938
      %979 = vmatprep.subr.mxu0 %v456
      %980 = vmatpush1.msra.mxu0 %v939
      %981 = vmatprep.subr.mxu0 %v457
      %982 = vmatpush1.msra.mxu0 %v940
      %983 = vmatprep.subr.mxu0 %v458
      %984 = vmatpush1.msra.mxu0 %v941
      %985 = vmatprep.subr.mxu0 %v459
      %986 = vmatpush1.msra.mxu0 %v942
      %987 = vmatprep.subr.mxu0 %v460
      %988 = vmatpush1.msra.mxu0 %v943
      %989 = vmatprep.subr.mxu0 %v461
      %990 = vmatpush1.msra.mxu0 %v944
      %991 = vmatprep.subr.mxu0 %v462
      %992 = vmatpush1.msra.mxu0 %v945
      %993 = vmatprep.subr.mxu0 %v463
      %994 = vmatpush1.msra.mxu0 %v946
      %995 = vmatprep.subr.mxu0 %v464
      %996 = vmatpush1.msra.mxu0 %v947
      %997 = vmatprep.subr.mxu0 %v465
      %998 = vmatpush1.msra.mxu0 %v948
      %999 = vmatprep.subr.mxu0 %v466
      %1000 = vmatpush1.msra.mxu0 %v949
      %1001 = vmatprep.subr.mxu0 %v467
      %1002 = vmatpush1.msra.mxu0 %v950
      %1003 = vmatprep.subr.mxu0 %v468
      %1004 = vmatpush1.msra.mxu0 %v951
      %1005 = vmatprep.subr.mxu0 %v469
      %1006 = vmatpush1.msra.mxu0 %v952
      %1007 = vmatprep.subr.mxu0 %v470
      %1008 = vmatpush1.msra.mxu0 %v953
      %1009 = vmatprep.subr.mxu0 %v471
      %1010 = vmatpush1.msra.mxu0 %v954
      %1011 = vmatprep.subr.mxu0 %v472
      %1012 = vmatpush1.msra.mxu0 %v955
      %1013 = vmatprep.subr.mxu0 %v473
      %1014 = vmatpush1.msra.mxu0 %v956
      %1015 = vmatprep.subr.mxu0 %v474
      %1016 = vmatpush1.msra.mxu0 %v957
      %1017 = vmatprep.subr.mxu0 %v475
      %1018 = vmatpush1.msra.mxu0 %v958
      %1019 = vmatprep.subr.mxu0 %v476
      %1020 = vmatpush1.msra.mxu0 %v959
      %1021 = vmatprep.subr.mxu0 %v477
      %1022 = vmatpush1.msra.mxu0 %v960
      %1023 = vmatprep.subr.mxu0 %v478
      %1024 = vmatpush1.msra.mxu0 %v961
      %1025 = vmatprep.subr.mxu0 %v479
      %1026 = vmatpush1.msra.mxu0 %v962
      %1027 = vmatprep.mubr.f32.mxu0 %v313
      %1028 = vmatmul.mubr.f32.gmra.mrb[0].mxu0 %v312
      %v1029 = vpop.f32.mrb[0].mxu0
      %v1030 = vadd.f32 0.0, %v1029
      %v1031 = vpop.f32.mrb[0].mxu0
      %v1032 = vadd.f32 0.0, %v1031
      %1033 = vmatprep.mubr.f32.mxu0 %v315
      %1034 = vmatmul.mubr.f32.gmra.mrb[0].mxu0 %v314
      %v1035 = vpop.f32.mrb[0].mxu0
      %v1036 = vadd.f32 0.0, %v1035
      %v1037 = vpop.f32.mrb[0].mxu0
      %v1038 = vadd.f32 0.0, %v1037
      %1039 = vmatprep.mubr.f32.mxu0 %v317
      %1040 = vmatmul.mubr.f32.gmra.mrb[0].mxu0 %v316
      %v1041 = vpop.f32.mrb[0].mxu0
      %v1042 = vadd.f32 0.0, %v1041
      %v1043 = vpop.f32.mrb[0].mxu0
      %v1044 = vadd.f32 0.0, %v1043
      %1045 = vmatprep.mubr.f32.mxu0 %v319
      %1046 = vmatmul.mubr.f32.gmra.mrb[0].mxu0 %v318
      %v1047 = vpop.f32.mrb[0].mxu0
      %v1048 = vadd.f32 0.0, %v1047
      %v1049 = vpop.f32.mrb[0].mxu0
      %v1050 = vadd.f32 0.0, %v1049
      %1051 = vmatprep.mubr.f32.mxu0 %v321
      %1052 = vmatmul.mubr.f32.gmra.mrb[0].mxu0 %v320
      %v1053 = vpop.f32.mrb[0].mxu0
      %v1054 = vadd.f32 0.0, %v1053
      %v1055 = vpop.f32.mrb[0].mxu0
      %v1056 = vadd.f32 0.0, %v1055
      %1057 = vmatprep.mubr.f32.mxu0 %v323
      %1058 = vmatmul.mubr.f32.gmra.mrb[0].mxu0 %v322
      %v1059 = vpop.f32.mrb[0].mxu0
      %v1060 = vadd.f32 0.0, %v1059
      %v1061 = vpop.f32.mrb[0].mxu0
      %v1062 = vadd.f32 0.0, %v1061
      %1063 = vmatprep.mubr.f32.mxu0 %v325
      %1064 = vmatmul.mubr.f32.gmra.mrb[0].mxu0 %v324
      %v1065 = vpop.f32.mrb[0].mxu0
      %v1066 = vadd.f32 0.0, %v1065
      %v1067 = vpop.f32.mrb[0].mxu0
      %v1068 = vadd.f32 0.0, %v1067
      %1069 = vmatprep.mubr.f32.mxu0 %v327
      %1070 = vmatmul.mubr.f32.gmra.mrb[0].mxu0 %v326
      %v1071 = vpop.f32.mrb[0].mxu0
      %v1072 = vadd.f32 0.0, %v1071
      %v1073 = vpop.f32.mrb[0].mxu0
      %v1074 = vadd.f32 0.0, %v1073
      %1075 = vmatprep.mubr.f32.mxu0 %v329
      %1076 = vmatmul.mubr.f32.gmra.mrb[0].mxu0 %v328
      %v1077 = vpop.f32.mrb[0].mxu0
      %v1078 = vadd.f32 0.0, %v1077
      %v1079 = vpop.f32.mrb[0].mxu0
      %v1080 = vadd.f32 0.0, %v1079
      %1081 = vmatprep.mubr.f32.mxu0 %v331
      %1082 = vmatmul.mubr.f32.gmra.mrb[0].mxu0 %v330
      %v1083 = vpop.f32.mrb[0].mxu0
      %v1084 = vadd.f32 0.0, %v1083
      %v1085 = vpop.f32.mrb[0].mxu0
      %v1086 = vadd.f32 0.0, %v1085
      %1087 = vmatprep.mubr.f32.mxu0 %v333
      %1088 = vmatmul.mubr.f32.gmra.mrb[0].mxu0 %v332
      %v1089 = vpop.f32.mrb[0].mxu0
      %v1090 = vadd.f32 0.0, %v1089
      %v1091 = vpop.f32.mrb[0].mxu0
      %v1092 = vadd.f32 0.0, %v1091
      %1093 = vmatprep.mubr.f32.mxu0 %v335
      %1094 = vmatmul.mubr.f32.gmra.mrb[0].mxu0 %v334
      %v1095 = vpop.f32.mrb[0].mxu0
      %v1096 = vadd.f32 0.0, %v1095
      %v1097 = vpop.f32.mrb[0].mxu0
      %v1098 = vadd.f32 0.0, %v1097
      %1099 = vmatprep.mubr.f32.mxu0 %v337
      %1100 = vmatmul.mubr.f32.gmra.mrb[0].mxu0 %v336
      %v1101 = vpop.f32.mrb[0].mxu0
      %v1102 = vadd.f32 0.0, %v1101
      %v1103 = vpop.f32.mrb[0].mxu0
      %v1104 = vadd.f32 0.0, %v1103
      %1105 = vmatprep.mubr.f32.mxu0 %v339
      %1106 = vmatmul.mubr.f32.gmra.mrb[0].mxu0 %v338
      %v1107 = vpop.f32.mrb[0].mxu0
      %v1108 = vadd.f32 0.0, %v1107
      %v1109 = vpop.f32.mrb[0].mxu0
      %v1110 = vadd.f32 0.0, %v1109
      %1111 = vmatprep.mubr.f32.mxu0 %v341
      %1112 = vmatmul.mubr.f32.gmra.mrb[0].mxu0 %v340
      %v1113 = vpop.f32.mrb[0].mxu0
      %v1114 = vadd.f32 0.0, %v1113
      %v1115 = vpop.f32.mrb[0].mxu0
      %v1116 = vadd.f32 0.0, %v1115
      %1117 = vmatprep.mubr.f32.mxu0 %v343
      %1118 = vmatmul.mubr.f32.gmra.mrb[0].mxu0 %v342
      %v1119 = vpop.f32.mrb[0].mxu0
      %v1120 = vadd.f32 0.0, %v1119
      %v1121 = vpop.f32.mrb[0].mxu0
      %v1122 = vadd.f32 0.0, %v1121
      %1123 = vmatprep.mubr.f32.mxu0 %v345
      %1124 = vmatmul.mubr.f32.gmra.mrb[0].mxu0 %v344
      %v1125 = vpop.f32.mrb[0].mxu0
      %v1126 = vadd.f32 0.0, %v1125
      %v1127 = vpop.f32.mrb[0].mxu0
      %v1128 = vadd.f32 0.0, %v1127
      %1129 = vmatprep.mubr.f32.mxu0 %v347
      %1130 = vmatmul.mubr.f32.gmra.mrb[0].mxu0 %v346
      %v1131 = vpop.f32.mrb[0].mxu0
      %v1132 = vadd.f32 0.0, %v1131
      %v1133 = vpop.f32.mrb[0].mxu0
      %v1134 = vadd.f32 0.0, %v1133
      %1135 = vmatprep.mubr.f32.mxu0 %v349
      %1136 = vmatmul.mubr.f32.gmra.mrb[0].mxu0 %v348
      %v1137 = vpop.f32.mrb[0].mxu0
      %v1138 = vadd.f32 0.0, %v1137
      %v1139 = vpop.f32.mrb[0].mxu0
      %v1140 = vadd.f32 0.0, %v1139
      %1141 = vmatprep.mubr.f32.mxu0 %v351
      %1142 = vmatmul.mubr.f32.gmra.mrb[0].mxu0 %v350
      %v1143 = vpop.f32.mrb[0].mxu0
      %v1144 = vadd.f32 0.0, %v1143
      %v1145 = vpop.f32.mrb[0].mxu0
      %v1146 = vadd.f32 0.0, %v1145
      %1147 = vmatprep.mubr.f32.mxu0 %v353
      %1148 = vmatmul.mubr.f32.gmra.mrb[0].mxu0 %v352
      %v1149 = vpop.f32.mrb[0].mxu0
      %v1150 = vadd.f32 0.0, %v1149
      %v1151 = vpop.f32.mrb[0].mxu0
      %v1152 = vadd.f32 0.0, %v1151
      %1153 = vmatprep.mubr.f32.mxu0 %v355
      %1154 = vmatmul.mubr.f32.gmra.mrb[0].mxu0 %v354
      %v1155 = vpop.f32.mrb[0].mxu0
      %v1156 = vadd.f32 0.0, %v1155
      %v1157 = vpop.f32.mrb[0].mxu0
      %v1158 = vadd.f32 0.0, %v1157
      %1159 = vmatprep.mubr.f32.mxu0 %v357
      %1160 = vmatmul.mubr.f32.gmra.mrb[0].mxu0 %v356
      %v1161 = vpop.f32.mrb[0].mxu0
      %v1162 = vadd.f32 0.0, %v1161
      %v1163 = vpop.f32.mrb[0].mxu0
      %v1164 = vadd.f32 0.0, %v1163
      %1165 = vmatprep.mubr.f32.mxu0 %v359
      %1166 = vmatmul.mubr.f32.gmra.mrb[0].mxu0 %v358
      %v1167 = vpop.f32.mrb[0].mxu0
      %v1168 = vadd.f32 0.0, %v1167
      %v1169 = vpop.f32.mrb[0].mxu0
      %v1170 = vadd.f32 0.0, %v1169
      %1171 = vmatprep.mubr.f32.mxu0 %v361
      %1172 = vmatmul.mubr.f32.gmra.mrb[0].mxu0 %v360
      %v1173 = vpop.f32.mrb[0].mxu0
      %v1174 = vadd.f32 0.0, %v1173
      %v1175 = vpop.f32.mrb[0].mxu0
      %v1176 = vadd.f32 0.0, %v1175
      %1177 = vmatprep.mubr.f32.mxu0 %v363
      %1178 = vmatmul.mubr.f32.gmra.mrb[0].mxu0 %v362
      %v1179 = vpop.f32.mrb[0].mxu0
      %v1180 = vadd.f32 0.0, %v1179
      %v1181 = vpop.f32.mrb[0].mxu0
      %v1182 = vadd.f32 0.0, %v1181
      %1183 = vmatprep.mubr.f32.mxu0 %v365
      %1184 = vmatmul.mubr.f32.gmra.mrb[0].mxu0 %v364
      %v1185 = vpop.f32.mrb[0].mxu0
      %v1186 = vadd.f32 0.0, %v1185
      %v1187 = vpop.f32.mrb[0].mxu0
      %v1188 = vadd.f32 0.0, %v1187
      %1189 = vmatprep.mubr.f32.mxu0 %v367
      %1190 = vmatmul.mubr.f32.gmra.mrb[0].mxu0 %v366
      %v1191 = vpop.f32.mrb[0].mxu0
      %v1192 = vadd.f32 0.0, %v1191
      %v1193 = vpop.f32.mrb[0].mxu0
      %v1194 = vadd.f32 0.0, %v1193
      %1195 = vmatprep.mubr.f32.mxu0 %v369
      %1196 = vmatmul.mubr.f32.gmra.mrb[0].mxu0 %v368
      %v1197 = vpop.f32.mrb[0].mxu0
      %v1198 = vadd.f32 0.0, %v1197
      %v1199 = vpop.f32.mrb[0].mxu0
      %v1200 = vadd.f32 0.0, %v1199
      %1201 = vmatprep.mubr.f32.mxu0 %v371
      %1202 = vmatmul.mubr.f32.gmra.mrb[0].mxu0 %v370
      %v1203 = vpop.f32.mrb[0].mxu0
      %v1204 = vadd.f32 0.0, %v1203
      %v1205 = vpop.f32.mrb[0].mxu0
      %v1206 = vadd.f32 0.0, %v1205
      %1207 = vmatprep.mubr.f32.mxu0 %v373
      %1208 = vmatmul.mubr.f32.gmra.mrb[0].mxu0 %v372
      %v1209 = vpop.f32.mrb[0].mxu0
      %v1210 = vadd.f32 0.0, %v1209
      %v1211 = vpop.f32.mrb[0].mxu0
      %v1212 = vadd.f32 0.0, %v1211
      %1213 = vmatprep.mubr.f32.mxu0 %v375
      %1214 = vmatmul.mubr.f32.gmra.mrb[0].mxu0 %v374
      %v1215 = vpop.f32.mrb[0].mxu0
      %v1216 = vadd.f32 0.0, %v1215
      %v1217 = vpop.f32.mrb[0].mxu0
      %v1218 = vadd.f32 0.0, %v1217
      %1219 = vdwg.mxu0
      %1252 = vrot.lane.b32.xlu0 %v1030, 96
      %v1253 = vpop.permute.xlu0 %1252
      %1254 = vrot.lane.b32.xlu0 %v1036, 96
      %v1255 = vpop.permute.xlu0 %1254
      %1256 = vrot.lane.b32.xlu0 %v1042, 96
      %v1257 = vpop.permute.xlu0 %1256
      %1258 = vrot.lane.b32.xlu0 %v1048, 96
      %v1259 = vpop.permute.xlu0 %1258
      %1260 = vrot.lane.b32.xlu0 %v1054, 96
      %v1261 = vpop.permute.xlu0 %1260
      %1262 = vrot.lane.b32.xlu0 %v1060, 96
      %v1263 = vpop.permute.xlu0 %1262
      %1264 = vrot.lane.b32.xlu0 %v1066, 96
      %v1265 = vpop.permute.xlu0 %1264
      %1266 = vrot.lane.b32.xlu0 %v1072, 96
      %v1267 = vpop.permute.xlu0 %1266
      %1268 = vrot.lane.b32.xlu0 %v1078, 96
      %v1269 = vpop.permute.xlu0 %1268
      %1270 = vrot.lane.b32.xlu0 %v1084, 96
      %v1271 = vpop.permute.xlu0 %1270
      %1272 = vrot.lane.b32.xlu0 %v1090, 96
      %v1273 = vpop.permute.xlu0 %1272
      %1274 = vrot.lane.b32.xlu0 %v1096, 96
      %v1275 = vpop.permute.xlu0 %1274
      %1276 = vrot.lane.b32.xlu0 %v1102, 96
      %v1277 = vpop.permute.xlu0 %1276
      %1278 = vrot.lane.b32.xlu0 %v1108, 96
      %v1279 = vpop.permute.xlu0 %1278
      %1280 = vrot.lane.b32.xlu0 %v1114, 96
      %v1281 = vpop.permute.xlu0 %1280
      %1282 = vrot.lane.b32.xlu0 %v1120, 96
      %v1283 = vpop.permute.xlu0 %1282
      %1284 = vrot.lane.b32.xlu0 %v1126, 96
      %v1285 = vpop.permute.xlu0 %1284
      %1286 = vrot.lane.b32.xlu0 %v1132, 96
      %v1287 = vpop.permute.xlu0 %1286
      %1288 = vrot.lane.b32.xlu0 %v1138, 96
      %v1289 = vpop.permute.xlu0 %1288
      %1290 = vrot.lane.b32.xlu0 %v1144, 96
      %v1291 = vpop.permute.xlu0 %1290
      %1292 = vrot.lane.b32.xlu0 %v1150, 96
      %v1293 = vpop.permute.xlu0 %1292
      %1294 = vrot.lane.b32.xlu0 %v1156, 96
      %v1295 = vpop.permute.xlu0 %1294
      %1296 = vrot.lane.b32.xlu0 %v1162, 96
      %v1297 = vpop.permute.xlu0 %1296
      %1298 = vrot.lane.b32.xlu0 %v1168, 96
      %v1299 = vpop.permute.xlu0 %1298
      %1300 = vrot.lane.b32.xlu0 %v1174, 96
      %v1301 = vpop.permute.xlu0 %1300
      %1302 = vrot.lane.b32.xlu0 %v1180, 96
      %v1303 = vpop.permute.xlu0 %1302
      %1304 = vrot.lane.b32.xlu0 %v1186, 96
      %v1305 = vpop.permute.xlu0 %1304
      %1306 = vrot.lane.b32.xlu0 %v1192, 96
      %v1307 = vpop.permute.xlu0 %1306
      %1308 = vrot.lane.b32.xlu0 %v1198, 96
      %v1309 = vpop.permute.xlu0 %1308
      %1310 = vrot.lane.b32.xlu0 %v1204, 96
      %v1311 = vpop.permute.xlu0 %1310
      %1312 = vrot.lane.b32.xlu0 %v1210, 96
      %v1313 = vpop.permute.xlu0 %1312
      %1314 = vrot.lane.b32.xlu0 %v1216, 96
      %v1315 = vpop.permute.xlu0 %1314
      %1316 = vrot.lane.b32.xlu0 %v1030, 64
      %v1317 = vpop.permute.xlu0 %1316
      %1318 = vrot.lane.b32.xlu0 %v1036, 64
      %v1319 = vpop.permute.xlu0 %1318
      %1320 = vrot.lane.b32.xlu0 %v1042, 64
      %v1321 = vpop.permute.xlu0 %1320
      %1322 = vrot.lane.b32.xlu0 %v1048, 64
      %v1323 = vpop.permute.xlu0 %1322
      %1324 = vrot.lane.b32.xlu0 %v1054, 64
      %v1325 = vpop.permute.xlu0 %1324
      %1326 = vrot.lane.b32.xlu0 %v1060, 64
      %v1327 = vpop.permute.xlu0 %1326
      %1328 = vrot.lane.b32.xlu0 %v1066, 64
      %v1329 = vpop.permute.xlu0 %1328
      %1330 = vrot.lane.b32.xlu0 %v1072, 64
      %v1331 = vpop.permute.xlu0 %1330
      %1332 = vrot.lane.b32.xlu0 %v1078, 64
      %v1333 = vpop.permute.xlu0 %1332
      %1334 = vrot.lane.b32.xlu0 %v1084, 64
      %v1335 = vpop.permute.xlu0 %1334
      %1336 = vrot.lane.b32.xlu0 %v1090, 64
      %v1337 = vpop.permute.xlu0 %1336
      %1338 = vrot.lane.b32.xlu0 %v1096, 64
      %v1339 = vpop.permute.xlu0 %1338
      %1340 = vrot.lane.b32.xlu0 %v1102, 64
      %v1341 = vpop.permute.xlu0 %1340
      %1342 = vrot.lane.b32.xlu0 %v1108, 64
      %v1343 = vpop.permute.xlu0 %1342
      %1344 = vrot.lane.b32.xlu0 %v1114, 64
      %v1345 = vpop.permute.xlu0 %1344
      %1346 = vrot.lane.b32.xlu0 %v1120, 64
      %v1347 = vpop.permute.xlu0 %1346
      %1348 = vrot.lane.b32.xlu0 %v1126, 64
      %v1349 = vpop.permute.xlu0 %1348
      %1350 = vrot.lane.b32.xlu0 %v1132, 64
      %v1351 = vpop.permute.xlu0 %1350
      %1352 = vrot.lane.b32.xlu0 %v1138, 64
      %v1353 = vpop.permute.xlu0 %1352
      %1354 = vrot.lane.b32.xlu0 %v1144, 64
      %v1355 = vpop.permute.xlu0 %1354
      %1356 = vrot.lane.b32.xlu0 %v1150, 64
      %v1357 = vpop.permute.xlu0 %1356
      %1358 = vrot.lane.b32.xlu0 %v1156, 64
      %v1359 = vpop.permute.xlu0 %1358
      %1360 = vrot.lane.b32.xlu0 %v1162, 64
      %v1361 = vpop.permute.xlu0 %1360
      %1362 = vrot.lane.b32.xlu0 %v1168, 64
      %v1363 = vpop.permute.xlu0 %1362
      %1364 = vrot.lane.b32.xlu0 %v1174, 64
      %v1365 = vpop.permute.xlu0 %1364
      %1366 = vrot.lane.b32.xlu0 %v1180, 64
      %v1367 = vpop.permute.xlu0 %1366
      %1368 = vrot.lane.b32.xlu0 %v1186, 64
      %v1369 = vpop.permute.xlu0 %1368
      %1370 = vrot.lane.b32.xlu0 %v1192, 64
      %v1371 = vpop.permute.xlu0 %1370
      %1372 = vrot.lane.b32.xlu0 %v1198, 64
      %v1373 = vpop.permute.xlu0 %1372
      %1374 = vrot.lane.b32.xlu0 %v1204, 64
      %v1375 = vpop.permute.xlu0 %1374
      %1376 = vrot.lane.b32.xlu0 %v1210, 64
      %v1377 = vpop.permute.xlu0 %1376
      %1378 = vrot.lane.b32.xlu0 %v1216, 64
      %v1379 = vpop.permute.xlu0 %1378
      %1380 = vrot.lane.b32.xlu0 %v1030, 32
      %v1381 = vpop.permute.xlu0 %1380
      %1382 = vrot.lane.b32.xlu0 %v1036, 32
      %v1383 = vpop.permute.xlu0 %1382
      %1384 = vrot.lane.b32.xlu0 %v1042, 32
      %v1385 = vpop.permute.xlu0 %1384
      %1386 = vrot.lane.b32.xlu0 %v1048, 32
      %v1387 = vpop.permute.xlu0 %1386
      %1388 = vrot.lane.b32.xlu0 %v1054, 32
      %v1389 = vpop.permute.xlu0 %1388
      %1390 = vrot.lane.b32.xlu0 %v1060, 32
      %v1391 = vpop.permute.xlu0 %1390
      %1392 = vrot.lane.b32.xlu0 %v1066, 32
      %v1393 = vpop.permute.xlu0 %1392
      %1394 = vrot.lane.b32.xlu0 %v1072, 32
      %v1395 = vpop.permute.xlu0 %1394
      %1396 = vrot.lane.b32.xlu0 %v1078, 32
      %v1397 = vpop.permute.xlu0 %1396
      %1398 = vrot.lane.b32.xlu0 %v1084, 32
      %v1399 = vpop.permute.xlu0 %1398
      %1400 = vrot.lane.b32.xlu0 %v1090, 32
      %v1401 = vpop.permute.xlu0 %1400
      %1402 = vrot.lane.b32.xlu0 %v1096, 32
      %v1403 = vpop.permute.xlu0 %1402
      %1404 = vrot.lane.b32.xlu0 %v1102, 32
      %v1405 = vpop.permute.xlu0 %1404
      %1406 = vrot.lane.b32.xlu0 %v1108, 32
      %v1407 = vpop.permute.xlu0 %1406
      %1408 = vrot.lane.b32.xlu0 %v1114, 32
      %v1409 = vpop.permute.xlu0 %1408
      %1410 = vrot.lane.b32.xlu0 %v1120, 32
      %v1411 = vpop.permute.xlu0 %1410
      %1412 = vrot.lane.b32.xlu0 %v1126, 32
      %v1413 = vpop.permute.xlu0 %1412
      %1414 = vrot.lane.b32.xlu0 %v1132, 32
      %v1415 = vpop.permute.xlu0 %1414
      %1416 = vrot.lane.b32.xlu0 %v1138, 32
      %v1417 = vpop.permute.xlu0 %1416
      %1418 = vrot.lane.b32.xlu0 %v1144, 32
      %v1419 = vpop.permute.xlu0 %1418
      %1420 = vrot.lane.b32.xlu0 %v1150, 32
      %v1421 = vpop.permute.xlu0 %1420
      %1422 = vrot.lane.b32.xlu0 %v1156, 32
      %v1423 = vpop.permute.xlu0 %1422
      %1424 = vrot.lane.b32.xlu0 %v1162, 32
      %v1425 = vpop.permute.xlu0 %1424
      %1426 = vrot.lane.b32.xlu0 %v1168, 32
      %v1427 = vpop.permute.xlu0 %1426
      %1428 = vrot.lane.b32.xlu0 %v1174, 32
      %v1429 = vpop.permute.xlu0 %1428
      %1430 = vrot.lane.b32.xlu0 %v1180, 32
      %v1431 = vpop.permute.xlu0 %1430
      %1432 = vrot.lane.b32.xlu0 %v1186, 32
      %v1433 = vpop.permute.xlu0 %1432
      %1434 = vrot.lane.b32.xlu0 %v1192, 32
      %v1435 = vpop.permute.xlu0 %1434
      %1436 = vrot.lane.b32.xlu0 %v1198, 32
      %v1437 = vpop.permute.xlu0 %1436
      %1438 = vrot.lane.b32.xlu0 %v1204, 32
      %v1439 = vpop.permute.xlu0 %1438
      %1440 = vrot.lane.b32.xlu0 %v1210, 32
      %v1441 = vpop.permute.xlu0 %1440
      %1442 = vrot.lane.b32.xlu0 %v1216, 32
      %v1443 = vpop.permute.xlu0 %1442
      %v1444 = vsel %vm864, %v1030, 0
      %v1446 = vsel %vm864, %v1036, 0
      %v1448 = vsel %vm864, %v1042, 0
      %v1450 = vsel %vm864, %v1048, 0
      %v1452 = vsel %vm864, %v1054, 0
      %v1454 = vsel %vm864, %v1060, 0
      %v1456 = vsel %vm864, %v1066, 0
      %v1458 = vsel %vm864, %v1072, 0
      %v1460 = vsel %vm864, %v1078, 0
      %v1462 = vsel %vm864, %v1084, 0
      %v1464 = vsel %vm864, %v1090, 0
      %v1466 = vsel %vm864, %v1096, 0
      %v1468 = vsel %vm864, %v1102, 0
      %v1470 = vsel %vm864, %v1108, 0
      %v1472 = vsel %vm864, %v1114, 0
      %v1474 = vsel %vm864, %v1120, 0
      %v1476 = vsel %vm864, %v1126, 0
      %v1478 = vsel %vm864, %v1132, 0
      %v1480 = vsel %vm864, %v1138, 0
      %v1482 = vsel %vm864, %v1144, 0
      %v1484 = vsel %vm864, %v1150, 0
      %v1486 = vsel %vm864, %v1156, 0
      %v1488 = vsel %vm864, %v1162, 0
      %v1490 = vsel %vm864, %v1168, 0
      %v1492 = vsel %vm864, %v1174, 0
      %v1494 = vsel %vm864, %v1180, 0
      %v1496 = vsel %vm864, %v1186, 0
      %v1498 = vsel %vm864, %v1192, 0
      %v1500 = vsel %vm864, %v1198, 0
      %v1502 = vsel %vm864, %v1204, 0
      %v1504 = vsel %vm864, %v1210, 0
      %v1506 = vsel %vm864, %v1216, 0
      %v1508 = vsel %vm864, %v1253, 0
      %v1510 = vsel %vm864, %v1255, 0
      %v1512 = vsel %vm864, %v1257, 0
      %v1514 = vsel %vm864, %v1259, 0
      %v1516 = vsel %vm864, %v1261, 0
      %v1518 = vsel %vm864, %v1263, 0
      %v1520 = vsel %vm864, %v1265, 0
      %v1522 = vsel %vm864, %v1267, 0
      %v1524 = vsel %vm864, %v1269, 0
      %v1526 = vsel %vm864, %v1271, 0
      %v1528 = vsel %vm864, %v1273, 0
      %v1530 = vsel %vm864, %v1275, 0
      %v1532 = vsel %vm864, %v1277, 0
      %v1534 = vsel %vm864, %v1279, 0
      %v1536 = vsel %vm864, %v1281, 0
      %v1538 = vsel %vm864, %v1283, 0
      %v1540 = vsel %vm864, %v1285, 0
      %v1542 = vsel %vm864, %v1287, 0
      %v1544 = vsel %vm864, %v1289, 0
      %v1546 = vsel %vm864, %v1291, 0
      %v1548 = vsel %vm864, %v1293, 0
      %v1550 = vsel %vm864, %v1295, 0
      %v1552 = vsel %vm864, %v1297, 0
      %v1554 = vsel %vm864, %v1299, 0
      %v1556 = vsel %vm864, %v1301, 0
      %v1558 = vsel %vm864, %v1303, 0
      %v1560 = vsel %vm864, %v1305, 0
      %v1562 = vsel %vm864, %v1307, 0
      %v1564 = vsel %vm864, %v1309, 0
      %v1566 = vsel %vm864, %v1311, 0
      %v1568 = vsel %vm864, %v1313, 0
      %v1570 = vsel %vm864, %v1315, 0
      %v1572 = vsel %vm864, %v1317, 0
      %v1574 = vsel %vm864, %v1319, 0
      %v1576 = vsel %vm864, %v1321, 0
      %v1578 = vsel %vm864, %v1323, 0
      %v1580 = vsel %vm864, %v1325, 0
      %v1582 = vsel %vm864, %v1327, 0
      %v1584 = vsel %vm864, %v1329, 0
      %v1586 = vsel %vm864, %v1331, 0
      %v1588 = vsel %vm864, %v1333, 0
      %v1590 = vsel %vm864, %v1335, 0
      %v1592 = vsel %vm864, %v1337, 0
      %v1594 = vsel %vm864, %v1339, 0
      %v1596 = vsel %vm864, %v1341, 0
      %v1598 = vsel %vm864, %v1343, 0
      %v1600 = vsel %vm864, %v1345, 0
      %v1602 = vsel %vm864, %v1347, 0
      %v1604 = vsel %vm864, %v1349, 0
      %v1606 = vsel %vm864, %v1351, 0
      %v1608 = vsel %vm864, %v1353, 0
      %v1610 = vsel %vm864, %v1355, 0
      %v1612 = vsel %vm864, %v1357, 0
      %v1614 = vsel %vm864, %v1359, 0
      %v1616 = vsel %vm864, %v1361, 0
      %v1618 = vsel %vm864, %v1363, 0
      %v1620 = vsel %vm864, %v1365, 0
      %v1622 = vsel %vm864, %v1367, 0
      %v1624 = vsel %vm864, %v1369, 0
      %v1626 = vsel %vm864, %v1371, 0
      %v1628 = vsel %vm864, %v1373, 0
      %v1630 = vsel %vm864, %v1375, 0
      %v1632 = vsel %vm864, %v1377, 0
      %v1634 = vsel %vm864, %v1379, 0
      %v1636 = vsel %vm864, %v1381, 0
      %v1638 = vsel %vm864, %v1383, 0
      %v1640 = vsel %vm864, %v1385, 0
      %v1642 = vsel %vm864, %v1387, 0
      %v1644 = vsel %vm864, %v1389, 0
      %v1646 = vsel %vm864, %v1391, 0
      %v1648 = vsel %vm864, %v1393, 0
      %v1650 = vsel %vm864, %v1395, 0
      %v1652 = vsel %vm864, %v1397, 0
      %v1654 = vsel %vm864, %v1399, 0
      %v1656 = vsel %vm864, %v1401, 0
      %v1658 = vsel %vm864, %v1403, 0
      %v1660 = vsel %vm864, %v1405, 0
      %v1662 = vsel %vm864, %v1407, 0
      %v1664 = vsel %vm864, %v1409, 0
      %v1666 = vsel %vm864, %v1411, 0
      %v1668 = vsel %vm864, %v1413, 0
      %v1670 = vsel %vm864, %v1415, 0
      %v1672 = vsel %vm864, %v1417, 0
      %v1674 = vsel %vm864, %v1419, 0
      %v1676 = vsel %vm864, %v1421, 0
      %v1678 = vsel %vm864, %v1423, 0
      %v1680 = vsel %vm864, %v1425, 0
      %v1682 = vsel %vm864, %v1427, 0
      %v1684 = vsel %vm864, %v1429, 0
      %v1686 = vsel %vm864, %v1431, 0
      %v1688 = vsel %vm864, %v1433, 0
      %v1690 = vsel %vm864, %v1435, 0
      %v1692 = vsel %vm864, %v1437, 0
      %v1694 = vsel %vm864, %v1439, 0
      %v1696 = vsel %vm864, %v1441, 0
      %v1698 = vsel %vm864, %v1443, 0
      %v1701 = vsel %vm864, %v1032, 0
      %v1704 = vsel %vm864, %v1038, 0
      %v1707 = vsel %vm864, %v1044, 0
      %v1710 = vsel %vm864, %v1050, 0
      %v1713 = vsel %vm864, %v1056, 0
      %v1716 = vsel %vm864, %v1062, 0
      %v1719 = vsel %vm864, %v1068, 0
      %v1722 = vsel %vm864, %v1074, 0
      %v1725 = vsel %vm864, %v1080, 0
      %v1728 = vsel %vm864, %v1086, 0
      %v1731 = vsel %vm864, %v1092, 0
      %v1734 = vsel %vm864, %v1098, 0
      %v1737 = vsel %vm864, %v1104, 0
      %v1740 = vsel %vm864, %v1110, 0
      %v1743 = vsel %vm864, %v1116, 0
      %v1746 = vsel %vm864, %v1122, 0
      %v1749 = vsel %vm864, %v1128, 0
      %v1752 = vsel %vm864, %v1134, 0
      %v1755 = vsel %vm864, %v1140, 0
      %v1758 = vsel %vm864, %v1146, 0
      %v1761 = vsel %vm864, %v1152, 0
      %v1764 = vsel %vm864, %v1158, 0
      %v1767 = vsel %vm864, %v1164, 0
      %v1770 = vsel %vm864, %v1170, 0
      %v1773 = vsel %vm864, %v1176, 0
      %v1776 = vsel %vm864, %v1182, 0
      %v1779 = vsel %vm864, %v1188, 0
      %v1782 = vsel %vm864, %v1194, 0
      %v1785 = vsel %vm864, %v1200, 0
      %v1788 = vsel %vm864, %v1206, 0
      %v1791 = vsel %vm864, %v1212, 0
      %v1794 = vsel %vm864, %v1218, 0
      %1796 = vmatprep.subr.mxu0 0.0
      %1797 = vmatpush1.msra.mxu0 %v380
      %1798 = vmatprep.subr.mxu0 0.0
      %1799 = vmatpush1.msra.mxu0 %v381
      %1800 = vmatprep.subr.mxu0 0.0
      %1801 = vmatpush1.msra.mxu0 %v382
      %1802 = vmatprep.subr.mxu0 0.0
      %1803 = vmatpush1.msra.mxu0 %v383
      %1804 = vmatprep.subr.mxu0 0.0
      %1805 = vmatpush1.msra.mxu0 0.0
      %1806 = vmatprep.subr.mxu0 0.0
      %1807 = vmatpush1.msra.mxu0 0.0
      %1808 = vmatprep.subr.mxu0 0.0
      %1809 = vmatpush1.msra.mxu0 0.0
      %1810 = vmatprep.subr.mxu0 0.0
      %1811 = vmatpush1.msra.mxu0 0.0
      %1812 = vmatprep.subr.mxu0 0.0
      %1813 = vmatpush1.msra.mxu0 0.0
      %1814 = vmatprep.subr.mxu0 0.0
      %1815 = vmatpush1.msra.mxu0 0.0
      %1816 = vmatprep.subr.mxu0 0.0
      %1817 = vmatpush1.msra.mxu0 0.0
      %1818 = vmatprep.subr.mxu0 0.0
      %1819 = vmatpush1.msra.mxu0 0.0
      %1820 = vmatprep.subr.mxu0 0.0
      %1821 = vmatpush1.msra.mxu0 0.0
      %1822 = vmatprep.subr.mxu0 0.0
      %1823 = vmatpush1.msra.mxu0 0.0
      %1824 = vmatprep.subr.mxu0 0.0
      %1825 = vmatpush1.msra.mxu0 0.0
      %1826 = vmatprep.subr.mxu0 0.0
      %1827 = vmatpush1.msra.mxu0 0.0
      %1828 = vmatprep.subr.mxu0 0.0
      %1829 = vmatpush1.msra.mxu0 0.0
      %1830 = vmatprep.subr.mxu0 0.0
      %1831 = vmatpush1.msra.mxu0 0.0
      %1832 = vmatprep.subr.mxu0 0.0
      %1833 = vmatpush1.msra.mxu0 0.0
      %1834 = vmatprep.subr.mxu0 0.0
      %1835 = vmatpush1.msra.mxu0 0.0
      %1836 = vmatprep.subr.mxu0 0.0
      %1837 = vmatpush1.msra.mxu0 0.0
      %1838 = vmatprep.subr.mxu0 0.0
      %1839 = vmatpush1.msra.mxu0 0.0
      %1840 = vmatprep.subr.mxu0 0.0
      %1841 = vmatpush1.msra.mxu0 0.0
      %1842 = vmatprep.subr.mxu0 0.0
      %1843 = vmatpush1.msra.mxu0 0.0
      %1844 = vmatprep.subr.mxu0 0.0
      %1845 = vmatpush1.msra.mxu0 0.0
      %1846 = vmatprep.subr.mxu0 0.0
      %1847 = vmatpush1.msra.mxu0 0.0
      %1848 = vmatprep.subr.mxu0 0.0
      %1849 = vmatpush1.msra.mxu0 0.0
      %1850 = vmatprep.subr.mxu0 0.0
      %1851 = vmatpush1.msra.mxu0 0.0
      %1852 = vmatprep.subr.mxu0 0.0
      %1853 = vmatpush1.msra.mxu0 0.0
      %1854 = vmatprep.subr.mxu0 0.0
      %1855 = vmatpush1.msra.mxu0 0.0
      %1856 = vmatprep.subr.mxu0 0.0
      %1857 = vmatpush1.msra.mxu0 0.0
      %1858 = vmatprep.subr.mxu0 0.0
      %1859 = vmatpush1.msra.mxu0 0.0
      %1860 = vmatprep.mubr.f32.mxu0 0.0
      %1861 = vmatmul.mubr.f32.gmra.mrb[0].mxu0 %v1444
      %v1862 = vpop.f32.mrb[0].mxu0
      %v1863 = vadd.f32 0.0, %v1862
      %v1864 = vpop.f32.mrb[0].mxu0
      %1865 = vmatprep.mubr.f32.mxu0 0.0
      %1866 = vmatmul.mubr.f32.gmra.mrb[0].mxu0 %v1446
      %v1867 = vpop.f32.mrb[0].mxu0
      %v1868 = vadd.f32 0.0, %v1867
      %v1869 = vpop.f32.mrb[0].mxu0
      %1870 = vmatprep.mubr.f32.mxu0 0.0
      %1871 = vmatmul.mubr.f32.gmra.mrb[0].mxu0 %v1448
      %v1872 = vpop.f32.mrb[0].mxu0
      %v1873 = vadd.f32 0.0, %v1872
      %v1874 = vpop.f32.mrb[0].mxu0
      %1875 = vmatprep.mubr.f32.mxu0 0.0
      %1876 = vmatmul.mubr.f32.gmra.mrb[0].mxu0 %v1450
      %v1877 = vpop.f32.mrb[0].mxu0
      %v1878 = vadd.f32 0.0, %v1877
      %v1879 = vpop.f32.mrb[0].mxu0
      %1880 = vmatprep.mubr.f32.mxu0 0.0
      %1881 = vmatmul.mubr.f32.gmra.mrb[0].mxu0 %v1452
      %v1882 = vpop.f32.mrb[0].mxu0
      %v1883 = vadd.f32 0.0, %v1882
      %v1884 = vpop.f32.mrb[0].mxu0
      %1885 = vmatprep.mubr.f32.mxu0 0.0
      %1886 = vmatmul.mubr.f32.gmra.mrb[0].mxu0 %v1454
      %v1887 = vpop.f32.mrb[0].mxu0
      %v1888 = vadd.f32 0.0, %v1887
      %v1889 = vpop.f32.mrb[0].mxu0
      %1890 = vmatprep.mubr.f32.mxu0 0.0
      %1891 = vmatmul.mubr.f32.gmra.mrb[0].mxu0 %v1456
      %v1892 = vpop.f32.mrb[0].mxu0
      %v1893 = vadd.f32 0.0, %v1892
      %v1894 = vpop.f32.mrb[0].mxu0
      %1895 = vmatprep.mubr.f32.mxu0 0.0
      %1896 = vmatmul.mubr.f32.gmra.mrb[0].mxu0 %v1458
      %v1897 = vpop.f32.mrb[0].mxu0
      %v1898 = vadd.f32 0.0, %v1897
      %v1899 = vpop.f32.mrb[0].mxu0
      %1900 = vmatprep.mubr.f32.mxu0 0.0
      %1901 = vmatmul.mubr.f32.gmra.mrb[0].mxu0 %v1460
      %v1902 = vpop.f32.mrb[0].mxu0
      %v1903 = vadd.f32 0.0, %v1902
      %v1904 = vpop.f32.mrb[0].mxu0
      %1905 = vmatprep.mubr.f32.mxu0 0.0
      %1906 = vmatmul.mubr.f32.gmra.mrb[0].mxu0 %v1462
      %v1907 = vpop.f32.mrb[0].mxu0
      %v1908 = vadd.f32 0.0, %v1907
      %v1909 = vpop.f32.mrb[0].mxu0
      %1910 = vmatprep.mubr.f32.mxu0 0.0
      %1911 = vmatmul.mubr.f32.gmra.mrb[0].mxu0 %v1464
      %v1912 = vpop.f32.mrb[0].mxu0
      %v1913 = vadd.f32 0.0, %v1912
      %v1914 = vpop.f32.mrb[0].mxu0
      %1915 = vmatprep.mubr.f32.mxu0 0.0
      %1916 = vmatmul.mubr.f32.gmra.mrb[0].mxu0 %v1466
      %v1917 = vpop.f32.mrb[0].mxu0
      %v1918 = vadd.f32 0.0, %v1917
      %v1919 = vpop.f32.mrb[0].mxu0
      %1920 = vmatprep.mubr.f32.mxu0 0.0
      %1921 = vmatmul.mubr.f32.gmra.mrb[0].mxu0 %v1468
      %v1922 = vpop.f32.mrb[0].mxu0
      %v1923 = vadd.f32 0.0, %v1922
      %v1924 = vpop.f32.mrb[0].mxu0
      %1925 = vmatprep.mubr.f32.mxu0 0.0
      %1926 = vmatmul.mubr.f32.gmra.mrb[0].mxu0 %v1470
      %v1927 = vpop.f32.mrb[0].mxu0
      %v1928 = vadd.f32 0.0, %v1927
      %v1929 = vpop.f32.mrb[0].mxu0
      %1930 = vmatprep.mubr.f32.mxu0 0.0
      %1931 = vmatmul.mubr.f32.gmra.mrb[0].mxu0 %v1472
      %v1932 = vpop.f32.mrb[0].mxu0
      %v1933 = vadd.f32 0.0, %v1932
      %v1934 = vpop.f32.mrb[0].mxu0
      %1935 = vmatprep.mubr.f32.mxu0 0.0
      %1936 = vmatmul.mubr.f32.gmra.mrb[0].mxu0 %v1474
      %v1937 = vpop.f32.mrb[0].mxu0
      %v1938 = vadd.f32 0.0, %v1937
      %v1939 = vpop.f32.mrb[0].mxu0
      %1940 = vmatprep.mubr.f32.mxu0 0.0
      %1941 = vmatmul.mubr.f32.gmra.mrb[0].mxu0 %v1476
      %v1942 = vpop.f32.mrb[0].mxu0
      %v1943 = vadd.f32 0.0, %v1942
      %v1944 = vpop.f32.mrb[0].mxu0
      %1945 = vmatprep.mubr.f32.mxu0 0.0
      %1946 = vmatmul.mubr.f32.gmra.mrb[0].mxu0 %v1478
      %v1947 = vpop.f32.mrb[0].mxu0
      %v1948 = vadd.f32 0.0, %v1947
      %v1949 = vpop.f32.mrb[0].mxu0
      %1950 = vmatprep.mubr.f32.mxu0 0.0
      %1951 = vmatmul.mubr.f32.gmra.mrb[0].mxu0 %v1480
      %v1952 = vpop.f32.mrb[0].mxu0
      %v1953 = vadd.f32 0.0, %v1952
      %v1954 = vpop.f32.mrb[0].mxu0
      %1955 = vmatprep.mubr.f32.mxu0 0.0
      %1956 = vmatmul.mubr.f32.gmra.mrb[0].mxu0 %v1482
      %v1957 = vpop.f32.mrb[0].mxu0
      %v1958 = vadd.f32 0.0, %v1957
      %v1959 = vpop.f32.mrb[0].mxu0
      %1960 = vmatprep.mubr.f32.mxu0 0.0
      %1961 = vmatmul.mubr.f32.gmra.mrb[0].mxu0 %v1484
      %v1962 = vpop.f32.mrb[0].mxu0
      %v1963 = vadd.f32 0.0, %v1962
      %v1964 = vpop.f32.mrb[0].mxu0
      %1965 = vmatprep.mubr.f32.mxu0 0.0
      %1966 = vmatmul.mubr.f32.gmra.mrb[0].mxu0 %v1486
      %v1967 = vpop.f32.mrb[0].mxu0
      %v1968 = vadd.f32 0.0, %v1967
      %v1969 = vpop.f32.mrb[0].mxu0
      %1970 = vmatprep.mubr.f32.mxu0 0.0
      %1971 = vmatmul.mubr.f32.gmra.mrb[0].mxu0 %v1488
      %v1972 = vpop.f32.mrb[0].mxu0
      %v1973 = vadd.f32 0.0, %v1972
      %v1974 = vpop.f32.mrb[0].mxu0
      %1975 = vmatprep.mubr.f32.mxu0 0.0
      %1976 = vmatmul.mubr.f32.gmra.mrb[0].mxu0 %v1490
      %v1977 = vpop.f32.mrb[0].mxu0
      %v1978 = vadd.f32 0.0, %v1977
      %v1979 = vpop.f32.mrb[0].mxu0
      %1980 = vmatprep.mubr.f32.mxu0 0.0
      %1981 = vmatmul.mubr.f32.gmra.mrb[0].mxu0 %v1492
      %v1982 = vpop.f32.mrb[0].mxu0
      %v1983 = vadd.f32 0.0, %v1982
      %v1984 = vpop.f32.mrb[0].mxu0
      %1985 = vmatprep.mubr.f32.mxu0 0.0
      %1986 = vmatmul.mubr.f32.gmra.mrb[0].mxu0 %v1494
      %v1987 = vpop.f32.mrb[0].mxu0
      %v1988 = vadd.f32 0.0, %v1987
      %v1989 = vpop.f32.mrb[0].mxu0
      %1990 = vmatprep.mubr.f32.mxu0 0.0
      %1991 = vmatmul.mubr.f32.gmra.mrb[0].mxu0 %v1496
      %v1992 = vpop.f32.mrb[0].mxu0
      %v1993 = vadd.f32 0.0, %v1992
      %v1994 = vpop.f32.mrb[0].mxu0
      %1995 = vmatprep.mubr.f32.mxu0 0.0
      %1996 = vmatmul.mubr.f32.gmra.mrb[0].mxu0 %v1498
      %v1997 = vpop.f32.mrb[0].mxu0
      %v1998 = vadd.f32 0.0, %v1997
      %v1999 = vpop.f32.mrb[0].mxu0
      %2000 = vmatprep.mubr.f32.mxu0 0.0
      %2001 = vmatmul.mubr.f32.gmra.mrb[0].mxu0 %v1500
      %v2002 = vpop.f32.mrb[0].mxu0
      %v2003 = vadd.f32 0.0, %v2002
      %v2004 = vpop.f32.mrb[0].mxu0
      %2005 = vmatprep.mubr.f32.mxu0 0.0
      %2006 = vmatmul.mubr.f32.gmra.mrb[0].mxu0 %v1502
      %v2007 = vpop.f32.mrb[0].mxu0
      %v2008 = vadd.f32 0.0, %v2007
      %v2009 = vpop.f32.mrb[0].mxu0
      %2010 = vmatprep.mubr.f32.mxu0 0.0
      %2011 = vmatmul.mubr.f32.gmra.mrb[0].mxu0 %v1504
      %v2012 = vpop.f32.mrb[0].mxu0
      %v2013 = vadd.f32 0.0, %v2012
      %v2014 = vpop.f32.mrb[0].mxu0
      %2015 = vmatprep.mubr.f32.mxu0 0.0
      %2016 = vmatmul.mubr.f32.gmra.mrb[0].mxu0 %v1506
      %v2017 = vpop.f32.mrb[0].mxu0
      %v2018 = vadd.f32 0.0, %v2017
      %v2019 = vpop.f32.mrb[0].mxu0
      %2020 = vmatprep.mubr.f32.mxu0 0.0
      %2021 = vmatmul.mubr.f32.gmra.mrb[0].mxu0 %v1508
      %v2022 = vpop.f32.mrb[0].mxu0
      %v2023 = vadd.f32 0.0, %v2022
      %v2024 = vpop.f32.mrb[0].mxu0
      %2025 = vmatprep.mubr.f32.mxu0 0.0
      %2026 = vmatmul.mubr.f32.gmra.mrb[0].mxu0 %v1510
      %v2027 = vpop.f32.mrb[0].mxu0
      %v2028 = vadd.f32 0.0, %v2027
      %v2029 = vpop.f32.mrb[0].mxu0
      %2030 = vmatprep.mubr.f32.mxu0 0.0
      %2031 = vmatmul.mubr.f32.gmra.mrb[0].mxu0 %v1512
      %v2032 = vpop.f32.mrb[0].mxu0
      %v2033 = vadd.f32 0.0, %v2032
      %v2034 = vpop.f32.mrb[0].mxu0
      %2035 = vmatprep.mubr.f32.mxu0 0.0
      %2036 = vmatmul.mubr.f32.gmra.mrb[0].mxu0 %v1514
      %v2037 = vpop.f32.mrb[0].mxu0
      %v2038 = vadd.f32 0.0, %v2037
      %v2039 = vpop.f32.mrb[0].mxu0
      %2040 = vmatprep.mubr.f32.mxu0 0.0
      %2041 = vmatmul.mubr.f32.gmra.mrb[0].mxu0 %v1516
      %v2042 = vpop.f32.mrb[0].mxu0
      %v2043 = vadd.f32 0.0, %v2042
      %v2044 = vpop.f32.mrb[0].mxu0
      %2045 = vmatprep.mubr.f32.mxu0 0.0
      %2046 = vmatmul.mubr.f32.gmra.mrb[0].mxu0 %v1518
      %v2047 = vpop.f32.mrb[0].mxu0
      %v2048 = vadd.f32 0.0, %v2047
      %v2049 = vpop.f32.mrb[0].mxu0
      %2050 = vmatprep.mubr.f32.mxu0 0.0
      %2051 = vmatmul.mubr.f32.gmra.mrb[0].mxu0 %v1520
      %v2052 = vpop.f32.mrb[0].mxu0
      %v2053 = vadd.f32 0.0, %v2052
      %v2054 = vpop.f32.mrb[0].mxu0
      %2055 = vmatprep.mubr.f32.mxu0 0.0
      %2056 = vmatmul.mubr.f32.gmra.mrb[0].mxu0 %v1522
      %v2057 = vpop.f32.mrb[0].mxu0
      %v2058 = vadd.f32 0.0, %v2057
      %v2059 = vpop.f32.mrb[0].mxu0
      %2060 = vmatprep.mubr.f32.mxu0 0.0
      %2061 = vmatmul.mubr.f32.gmra.mrb[0].mxu0 %v1524
      %v2062 = vpop.f32.mrb[0].mxu0
      %v2063 = vadd.f32 0.0, %v2062
      %v2064 = vpop.f32.mrb[0].mxu0
      %2065 = vmatprep.mubr.f32.mxu0 0.0
      %2066 = vmatmul.mubr.f32.gmra.mrb[0].mxu0 %v1526
      %v2067 = vpop.f32.mrb[0].mxu0
      %v2068 = vadd.f32 0.0, %v2067
      %v2069 = vpop.f32.mrb[0].mxu0
      %2070 = vmatprep.mubr.f32.mxu0 0.0
      %2071 = vmatmul.mubr.f32.gmra.mrb[0].mxu0 %v1528
      %v2072 = vpop.f32.mrb[0].mxu0
      %v2073 = vadd.f32 0.0, %v2072
      %v2074 = vpop.f32.mrb[0].mxu0
      %2075 = vmatprep.mubr.f32.mxu0 0.0
      %2076 = vmatmul.mubr.f32.gmra.mrb[0].mxu0 %v1530
      %v2077 = vpop.f32.mrb[0].mxu0
      %v2078 = vadd.f32 0.0, %v2077
      %v2079 = vpop.f32.mrb[0].mxu0
      %2080 = vmatprep.mubr.f32.mxu0 0.0
      %2081 = vmatmul.mubr.f32.gmra.mrb[0].mxu0 %v1532
      %v2082 = vpop.f32.mrb[0].mxu0
      %v2083 = vadd.f32 0.0, %v2082
      %v2084 = vpop.f32.mrb[0].mxu0
      %2085 = vmatprep.mubr.f32.mxu0 0.0
      %2086 = vmatmul.mubr.f32.gmra.mrb[0].mxu0 %v1534
      %v2087 = vpop.f32.mrb[0].mxu0
      %v2088 = vadd.f32 0.0, %v2087
      %v2089 = vpop.f32.mrb[0].mxu0
      %2090 = vmatprep.mubr.f32.mxu0 0.0
      %2091 = vmatmul.mubr.f32.gmra.mrb[0].mxu0 %v1536
      %v2092 = vpop.f32.mrb[0].mxu0
      %v2093 = vadd.f32 0.0, %v2092
      %v2094 = vpop.f32.mrb[0].mxu0
      %2095 = vmatprep.mubr.f32.mxu0 0.0
      %2096 = vmatmul.mubr.f32.gmra.mrb[0].mxu0 %v1538
      %v2097 = vpop.f32.mrb[0].mxu0
      %v2098 = vadd.f32 0.0, %v2097
      %v2099 = vpop.f32.mrb[0].mxu0
      %2100 = vmatprep.mubr.f32.mxu0 0.0
      %2101 = vmatmul.mubr.f32.gmra.mrb[0].mxu0 %v1540
      %v2102 = vpop.f32.mrb[0].mxu0
      %v2103 = vadd.f32 0.0, %v2102
      %v2104 = vpop.f32.mrb[0].mxu0
      %2105 = vmatprep.mubr.f32.mxu0 0.0
      %2106 = vmatmul.mubr.f32.gmra.mrb[0].mxu0 %v1542
      %v2107 = vpop.f32.mrb[0].mxu0
      %v2108 = vadd.f32 0.0, %v2107
      %v2109 = vpop.f32.mrb[0].mxu0
      %2110 = vmatprep.mubr.f32.mxu0 0.0
      %2111 = vmatmul.mubr.f32.gmra.mrb[0].mxu0 %v1544
      %v2112 = vpop.f32.mrb[0].mxu0
      %v2113 = vadd.f32 0.0, %v2112
      %v2114 = vpop.f32.mrb[0].mxu0
      %2115 = vmatprep.mubr.f32.mxu0 0.0
      %2116 = vmatmul.mubr.f32.gmra.mrb[0].mxu0 %v1546
      %v2117 = vpop.f32.mrb[0].mxu0
      %v2118 = vadd.f32 0.0, %v2117
      %v2119 = vpop.f32.mrb[0].mxu0
      %2120 = vmatprep.mubr.f32.mxu0 0.0
      %2121 = vmatmul.mubr.f32.gmra.mrb[0].mxu0 %v1548
      %v2122 = vpop.f32.mrb[0].mxu0
      %v2123 = vadd.f32 0.0, %v2122
      %v2124 = vpop.f32.mrb[0].mxu0
      %2125 = vmatprep.mubr.f32.mxu0 0.0
      %2126 = vmatmul.mubr.f32.gmra.mrb[0].mxu0 %v1550
      %v2127 = vpop.f32.mrb[0].mxu0
      %v2128 = vadd.f32 0.0, %v2127
      %v2129 = vpop.f32.mrb[0].mxu0
      %2130 = vmatprep.mubr.f32.mxu0 0.0
      %2131 = vmatmul.mubr.f32.gmra.mrb[0].mxu0 %v1552
      %v2132 = vpop.f32.mrb[0].mxu0
      %v2133 = vadd.f32 0.0, %v2132
      %v2134 = vpop.f32.mrb[0].mxu0
      %2135 = vmatprep.mubr.f32.mxu0 0.0
      %2136 = vmatmul.mubr.f32.gmra.mrb[0].mxu0 %v1554
      %v2137 = vpop.f32.mrb[0].mxu0
      %v2138 = vadd.f32 0.0, %v2137
      %v2139 = vpop.f32.mrb[0].mxu0
      %2140 = vmatprep.mubr.f32.mxu0 0.0
      %2141 = vmatmul.mubr.f32.gmra.mrb[0].mxu0 %v1556
      %v2142 = vpop.f32.mrb[0].mxu0
      %v2143 = vadd.f32 0.0, %v2142
      %v2144 = vpop.f32.mrb[0].mxu0
      %2145 = vmatprep.mubr.f32.mxu0 0.0
      %2146 = vmatmul.mubr.f32.gmra.mrb[0].mxu0 %v1558
      %v2147 = vpop.f32.mrb[0].mxu0
      %v2148 = vadd.f32 0.0, %v2147
      %v2149 = vpop.f32.mrb[0].mxu0
      %2150 = vmatprep.mubr.f32.mxu0 0.0
      %2151 = vmatmul.mubr.f32.gmra.mrb[0].mxu0 %v1560
      %v2152 = vpop.f32.mrb[0].mxu0
      %v2153 = vadd.f32 0.0, %v2152
      %v2154 = vpop.f32.mrb[0].mxu0
      %2155 = vmatprep.mubr.f32.mxu0 0.0
      %2156 = vmatmul.mubr.f32.gmra.mrb[0].mxu0 %v1562
      %v2157 = vpop.f32.mrb[0].mxu0
      %v2158 = vadd.f32 0.0, %v2157
      %v2159 = vpop.f32.mrb[0].mxu0
      %2160 = vmatprep.mubr.f32.mxu0 0.0
      %2161 = vmatmul.mubr.f32.gmra.mrb[0].mxu0 %v1564
      %v2162 = vpop.f32.mrb[0].mxu0
      %v2163 = vadd.f32 0.0, %v2162
      %v2164 = vpop.f32.mrb[0].mxu0
      %2165 = vmatprep.mubr.f32.mxu0 0.0
      %2166 = vmatmul.mubr.f32.gmra.mrb[0].mxu0 %v1566
      %v2167 = vpop.f32.mrb[0].mxu0
      %v2168 = vadd.f32 0.0, %v2167
      %v2169 = vpop.f32.mrb[0].mxu0
      %2170 = vmatprep.mubr.f32.mxu0 0.0
      %2171 = vmatmul.mubr.f32.gmra.mrb[0].mxu0 %v1568
      %v2172 = vpop.f32.mrb[0].mxu0
      %v2173 = vadd.f32 0.0, %v2172
      %v2174 = vpop.f32.mrb[0].mxu0
      %2175 = vmatprep.mubr.f32.mxu0 0.0
      %2176 = vmatmul.mubr.f32.gmra.mrb[0].mxu0 %v1570
      %v2177 = vpop.f32.mrb[0].mxu0
      %v2178 = vadd.f32 0.0, %v2177
      %v2179 = vpop.f32.mrb[0].mxu0
      %2180 = vmatprep.mubr.f32.mxu0 0.0
      %2181 = vmatmul.mubr.f32.gmra.mrb[0].mxu0 %v1572
      %v2182 = vpop.f32.mrb[0].mxu0
      %v2183 = vadd.f32 0.0, %v2182
      %v2184 = vpop.f32.mrb[0].mxu0
      %2185 = vmatprep.mubr.f32.mxu0 0.0
      %2186 = vmatmul.mubr.f32.gmra.mrb[0].mxu0 %v1574
      %v2187 = vpop.f32.mrb[0].mxu0
      %v2188 = vadd.f32 0.0, %v2187
      %v2189 = vpop.f32.mrb[0].mxu0
      %2190 = vmatprep.mubr.f32.mxu0 0.0
      %2191 = vmatmul.mubr.f32.gmra.mrb[0].mxu0 %v1576
      %v2192 = vpop.f32.mrb[0].mxu0
      %v2193 = vadd.f32 0.0, %v2192
      %v2194 = vpop.f32.mrb[0].mxu0
      %2195 = vmatprep.mubr.f32.mxu0 0.0
      %2196 = vmatmul.mubr.f32.gmra.mrb[0].mxu0 %v1578
      %v2197 = vpop.f32.mrb[0].mxu0
      %v2198 = vadd.f32 0.0, %v2197
      %v2199 = vpop.f32.mrb[0].mxu0
      %2200 = vmatprep.mubr.f32.mxu0 0.0
      %2201 = vmatmul.mubr.f32.gmra.mrb[0].mxu0 %v1580
      %v2202 = vpop.f32.mrb[0].mxu0
      %v2203 = vadd.f32 0.0, %v2202
      %v2204 = vpop.f32.mrb[0].mxu0
      %2205 = vmatprep.mubr.f32.mxu0 0.0
      %2206 = vmatmul.mubr.f32.gmra.mrb[0].mxu0 %v1582
      %v2207 = vpop.f32.mrb[0].mxu0
      %v2208 = vadd.f32 0.0, %v2207
      %v2209 = vpop.f32.mrb[0].mxu0
      %2210 = vmatprep.mubr.f32.mxu0 0.0
      %2211 = vmatmul.mubr.f32.gmra.mrb[0].mxu0 %v1584
      %v2212 = vpop.f32.mrb[0].mxu0
      %v2213 = vadd.f32 0.0, %v2212
      %v2214 = vpop.f32.mrb[0].mxu0
      %2215 = vmatprep.mubr.f32.mxu0 0.0
      %2216 = vmatmul.mubr.f32.gmra.mrb[0].mxu0 %v1586
      %v2217 = vpop.f32.mrb[0].mxu0
      %v2218 = vadd.f32 0.0, %v2217
      %v2219 = vpop.f32.mrb[0].mxu0
      %2220 = vmatprep.mubr.f32.mxu0 0.0
      %2221 = vmatmul.mubr.f32.gmra.mrb[0].mxu0 %v1588
      %v2222 = vpop.f32.mrb[0].mxu0
      %v2223 = vadd.f32 0.0, %v2222
      %v2224 = vpop.f32.mrb[0].mxu0
      %2225 = vmatprep.mubr.f32.mxu0 0.0
      %2226 = vmatmul.mubr.f32.gmra.mrb[0].mxu0 %v1590
      %v2227 = vpop.f32.mrb[0].mxu0
      %v2228 = vadd.f32 0.0, %v2227
      %v2229 = vpop.f32.mrb[0].mxu0
      %2230 = vmatprep.mubr.f32.mxu0 0.0
      %2231 = vmatmul.mubr.f32.gmra.mrb[0].mxu0 %v1592
      %v2232 = vpop.f32.mrb[0].mxu0
      %v2233 = vadd.f32 0.0, %v2232
      %v2234 = vpop.f32.mrb[0].mxu0
      %2235 = vmatprep.mubr.f32.mxu0 0.0
      %2236 = vmatmul.mubr.f32.gmra.mrb[0].mxu0 %v1594
      %v2237 = vpop.f32.mrb[0].mxu0
      %v2238 = vadd.f32 0.0, %v2237
      %v2239 = vpop.f32.mrb[0].mxu0
      %2240 = vmatprep.mubr.f32.mxu0 0.0
      %2241 = vmatmul.mubr.f32.gmra.mrb[0].mxu0 %v1596
      %v2242 = vpop.f32.mrb[0].mxu0
      %v2243 = vadd.f32 0.0, %v2242
      %v2244 = vpop.f32.mrb[0].mxu0
      %2245 = vmatprep.mubr.f32.mxu0 0.0
      %2246 = vmatmul.mubr.f32.gmra.mrb[0].mxu0 %v1598
      %v2247 = vpop.f32.mrb[0].mxu0
      %v2248 = vadd.f32 0.0, %v2247
      %v2249 = vpop.f32.mrb[0].mxu0
      %2250 = vmatprep.mubr.f32.mxu0 0.0
      %2251 = vmatmul.mubr.f32.gmra.mrb[0].mxu0 %v1600
      %v2252 = vpop.f32.mrb[0].mxu0
      %v2253 = vadd.f32 0.0, %v2252
      %v2254 = vpop.f32.mrb[0].mxu0
      %2255 = vmatprep.mubr.f32.mxu0 0.0
      %2256 = vmatmul.mubr.f32.gmra.mrb[0].mxu0 %v1602
      %v2257 = vpop.f32.mrb[0].mxu0
      %v2258 = vadd.f32 0.0, %v2257
      %v2259 = vpop.f32.mrb[0].mxu0
      %2260 = vmatprep.mubr.f32.mxu0 0.0
      %2261 = vmatmul.mubr.f32.gmra.mrb[0].mxu0 %v1604
      %v2262 = vpop.f32.mrb[0].mxu0
      %v2263 = vadd.f32 0.0, %v2262
      %v2264 = vpop.f32.mrb[0].mxu0
      %2265 = vmatprep.mubr.f32.mxu0 0.0
      %2266 = vmatmul.mubr.f32.gmra.mrb[0].mxu0 %v1606
      %v2267 = vpop.f32.mrb[0].mxu0
      %v2268 = vadd.f32 0.0, %v2267
      %v2269 = vpop.f32.mrb[0].mxu0
      %2270 = vmatprep.mubr.f32.mxu0 0.0
      %2271 = vmatmul.mubr.f32.gmra.mrb[0].mxu0 %v1608
      %v2272 = vpop.f32.mrb[0].mxu0
      %v2273 = vadd.f32 0.0, %v2272
      %v2274 = vpop.f32.mrb[0].mxu0
      %2275 = vmatprep.mubr.f32.mxu0 0.0
      %2276 = vmatmul.mubr.f32.gmra.mrb[0].mxu0 %v1610
      %v2277 = vpop.f32.mrb[0].mxu0
      %v2278 = vadd.f32 0.0, %v2277
      %v2279 = vpop.f32.mrb[0].mxu0
      %2280 = vmatprep.mubr.f32.mxu0 0.0
      %2281 = vmatmul.mubr.f32.gmra.mrb[0].mxu0 %v1612
      %v2282 = vpop.f32.mrb[0].mxu0
      %v2283 = vadd.f32 0.0, %v2282
      %v2284 = vpop.f32.mrb[0].mxu0
      %2285 = vmatprep.mubr.f32.mxu0 0.0
      %2286 = vmatmul.mubr.f32.gmra.mrb[0].mxu0 %v1614
      %v2287 = vpop.f32.mrb[0].mxu0
      %v2288 = vadd.f32 0.0, %v2287
      %v2289 = vpop.f32.mrb[0].mxu0
      %2290 = vmatprep.mubr.f32.mxu0 0.0
      %2291 = vmatmul.mubr.f32.gmra.mrb[0].mxu0 %v1616
      %v2292 = vpop.f32.mrb[0].mxu0
      %v2293 = vadd.f32 0.0, %v2292
      %v2294 = vpop.f32.mrb[0].mxu0
      %2295 = vmatprep.mubr.f32.mxu0 0.0
      %2296 = vmatmul.mubr.f32.gmra.mrb[0].mxu0 %v1618
      %v2297 = vpop.f32.mrb[0].mxu0
      %v2298 = vadd.f32 0.0, %v2297
      %v2299 = vpop.f32.mrb[0].mxu0
      %2300 = vmatprep.mubr.f32.mxu0 0.0
      %2301 = vmatmul.mubr.f32.gmra.mrb[0].mxu0 %v1620
      %v2302 = vpop.f32.mrb[0].mxu0
      %v2303 = vadd.f32 0.0, %v2302
      %v2304 = vpop.f32.mrb[0].mxu0
      %2305 = vmatprep.mubr.f32.mxu0 0.0
      %2306 = vmatmul.mubr.f32.gmra.mrb[0].mxu0 %v1622
      %v2307 = vpop.f32.mrb[0].mxu0
      %v2308 = vadd.f32 0.0, %v2307
      %v2309 = vpop.f32.mrb[0].mxu0
      %2310 = vmatprep.mubr.f32.mxu0 0.0
      %2311 = vmatmul.mubr.f32.gmra.mrb[0].mxu0 %v1624
      %v2312 = vpop.f32.mrb[0].mxu0
      %v2313 = vadd.f32 0.0, %v2312
      %v2314 = vpop.f32.mrb[0].mxu0
      %2315 = vmatprep.mubr.f32.mxu0 0.0
      %2316 = vmatmul.mubr.f32.gmra.mrb[0].mxu0 %v1626
      %v2317 = vpop.f32.mrb[0].mxu0
      %v2318 = vadd.f32 0.0, %v2317
      %v2319 = vpop.f32.mrb[0].mxu0
      %2320 = vmatprep.mubr.f32.mxu0 0.0
      %2321 = vmatmul.mubr.f32.gmra.mrb[0].mxu0 %v1628
      %v2322 = vpop.f32.mrb[0].mxu0
      %v2323 = vadd.f32 0.0, %v2322
      %v2324 = vpop.f32.mrb[0].mxu0
      %2325 = vmatprep.mubr.f32.mxu0 0.0
      %2326 = vmatmul.mubr.f32.gmra.mrb[0].mxu0 %v1630
      %v2327 = vpop.f32.mrb[0].mxu0
      %v2328 = vadd.f32 0.0, %v2327
      %v2329 = vpop.f32.mrb[0].mxu0
      %2330 = vmatprep.mubr.f32.mxu0 0.0
      %2331 = vmatmul.mubr.f32.gmra.mrb[0].mxu0 %v1632
      %v2332 = vpop.f32.mrb[0].mxu0
      %v2333 = vadd.f32 0.0, %v2332
      %v2334 = vpop.f32.mrb[0].mxu0
      %2335 = vmatprep.mubr.f32.mxu0 0.0
      %2336 = vmatmul.mubr.f32.gmra.mrb[0].mxu0 %v1634
      %v2337 = vpop.f32.mrb[0].mxu0
      %v2338 = vadd.f32 0.0, %v2337
      %v2339 = vpop.f32.mrb[0].mxu0
      %2340 = vmatprep.mubr.f32.mxu0 0.0
      %2341 = vmatmul.mubr.f32.gmra.mrb[0].mxu0 %v1636
      %v2342 = vpop.f32.mrb[0].mxu0
      %v2343 = vadd.f32 0.0, %v2342
      %v2344 = vpop.f32.mrb[0].mxu0
      %2345 = vmatprep.mubr.f32.mxu0 0.0
      %2346 = vmatmul.mubr.f32.gmra.mrb[0].mxu0 %v1638
      %v2347 = vpop.f32.mrb[0].mxu0
      %v2348 = vadd.f32 0.0, %v2347
      %v2349 = vpop.f32.mrb[0].mxu0
      %2350 = vmatprep.mubr.f32.mxu0 0.0
      %2351 = vmatmul.mubr.f32.gmra.mrb[0].mxu0 %v1640
      %v2352 = vpop.f32.mrb[0].mxu0
      %v2353 = vadd.f32 0.0, %v2352
      %v2354 = vpop.f32.mrb[0].mxu0
      %2355 = vmatprep.mubr.f32.mxu0 0.0
      %2356 = vmatmul.mubr.f32.gmra.mrb[0].mxu0 %v1642
      %v2357 = vpop.f32.mrb[0].mxu0
      %v2358 = vadd.f32 0.0, %v2357
      %v2359 = vpop.f32.mrb[0].mxu0
      %2360 = vmatprep.mubr.f32.mxu0 0.0
      %2361 = vmatmul.mubr.f32.gmra.mrb[0].mxu0 %v1644
      %v2362 = vpop.f32.mrb[0].mxu0
      %v2363 = vadd.f32 0.0, %v2362
      %v2364 = vpop.f32.mrb[0].mxu0
      %2365 = vmatprep.mubr.f32.mxu0 0.0
      %2366 = vmatmul.mubr.f32.gmra.mrb[0].mxu0 %v1646
      %v2367 = vpop.f32.mrb[0].mxu0
      %v2368 = vadd.f32 0.0, %v2367
      %v2369 = vpop.f32.mrb[0].mxu0
      %2370 = vmatprep.mubr.f32.mxu0 0.0
      %2371 = vmatmul.mubr.f32.gmra.mrb[0].mxu0 %v1648
      %v2372 = vpop.f32.mrb[0].mxu0
      %v2373 = vadd.f32 0.0, %v2372
      %v2374 = vpop.f32.mrb[0].mxu0
      %2375 = vmatprep.mubr.f32.mxu0 0.0
      %2376 = vmatmul.mubr.f32.gmra.mrb[0].mxu0 %v1650
      %v2377 = vpop.f32.mrb[0].mxu0
      %v2378 = vadd.f32 0.0, %v2377
      %v2379 = vpop.f32.mrb[0].mxu0
      %2380 = vmatprep.mubr.f32.mxu0 0.0
      %2381 = vmatmul.mubr.f32.gmra.mrb[0].mxu0 %v1652
      %v2382 = vpop.f32.mrb[0].mxu0
      %v2383 = vadd.f32 0.0, %v2382
      %v2384 = vpop.f32.mrb[0].mxu0
      %2385 = vmatprep.mubr.f32.mxu0 0.0
      %2386 = vmatmul.mubr.f32.gmra.mrb[0].mxu0 %v1654
      %v2387 = vpop.f32.mrb[0].mxu0
      %v2388 = vadd.f32 0.0, %v2387
      %v2389 = vpop.f32.mrb[0].mxu0
      %2390 = vmatprep.mubr.f32.mxu0 0.0
      %2391 = vmatmul.mubr.f32.gmra.mrb[0].mxu0 %v1656
      %v2392 = vpop.f32.mrb[0].mxu0
      %v2393 = vadd.f32 0.0, %v2392
      %v2394 = vpop.f32.mrb[0].mxu0
      %2395 = vmatprep.mubr.f32.mxu0 0.0
      %2396 = vmatmul.mubr.f32.gmra.mrb[0].mxu0 %v1658
      %v2397 = vpop.f32.mrb[0].mxu0
      %v2398 = vadd.f32 0.0, %v2397
      %v2399 = vpop.f32.mrb[0].mxu0
      %2400 = vmatprep.mubr.f32.mxu0 0.0
      %2401 = vmatmul.mubr.f32.gmra.mrb[0].mxu0 %v1660
      %v2402 = vpop.f32.mrb[0].mxu0
      %v2403 = vadd.f32 0.0, %v2402
      %v2404 = vpop.f32.mrb[0].mxu0
      %2405 = vmatprep.mubr.f32.mxu0 0.0
      %2406 = vmatmul.mubr.f32.gmra.mrb[0].mxu0 %v1662
      %v2407 = vpop.f32.mrb[0].mxu0
      %v2408 = vadd.f32 0.0, %v2407
      %v2409 = vpop.f32.mrb[0].mxu0
      %2410 = vmatprep.mubr.f32.mxu0 0.0
      %2411 = vmatmul.mubr.f32.gmra.mrb[0].mxu0 %v1664
      %v2412 = vpop.f32.mrb[0].mxu0
      %v2413 = vadd.f32 0.0, %v2412
      %v2414 = vpop.f32.mrb[0].mxu0
      %2415 = vmatprep.mubr.f32.mxu0 0.0
      %2416 = vmatmul.mubr.f32.gmra.mrb[0].mxu0 %v1666
      %v2417 = vpop.f32.mrb[0].mxu0
      %v2418 = vadd.f32 0.0, %v2417
      %v2419 = vpop.f32.mrb[0].mxu0
      %2420 = vmatprep.mubr.f32.mxu0 0.0
      %2421 = vmatmul.mubr.f32.gmra.mrb[0].mxu0 %v1668
      %v2422 = vpop.f32.mrb[0].mxu0
      %v2423 = vadd.f32 0.0, %v2422
      %v2424 = vpop.f32.mrb[0].mxu0
      %2425 = vmatprep.mubr.f32.mxu0 0.0
      %2426 = vmatmul.mubr.f32.gmra.mrb[0].mxu0 %v1670
      %v2427 = vpop.f32.mrb[0].mxu0
      %v2428 = vadd.f32 0.0, %v2427
      %v2429 = vpop.f32.mrb[0].mxu0
      %2430 = vmatprep.mubr.f32.mxu0 0.0
      %2431 = vmatmul.mubr.f32.gmra.mrb[0].mxu0 %v1672
      %v2432 = vpop.f32.mrb[0].mxu0
      %v2433 = vadd.f32 0.0, %v2432
      %v2434 = vpop.f32.mrb[0].mxu0
      %2435 = vmatprep.mubr.f32.mxu0 0.0
      %2436 = vmatmul.mubr.f32.gmra.mrb[0].mxu0 %v1674
      %v2437 = vpop.f32.mrb[0].mxu0
      %v2438 = vadd.f32 0.0, %v2437
      %v2439 = vpop.f32.mrb[0].mxu0
      %2440 = vmatprep.mubr.f32.mxu0 0.0
      %2441 = vmatmul.mubr.f32.gmra.mrb[0].mxu0 %v1676
      %v2442 = vpop.f32.mrb[0].mxu0
      %v2443 = vadd.f32 0.0, %v2442
      %v2444 = vpop.f32.mrb[0].mxu0
      %2445 = vmatprep.mubr.f32.mxu0 0.0
      %2446 = vmatmul.mubr.f32.gmra.mrb[0].mxu0 %v1678
      %v2447 = vpop.f32.mrb[0].mxu0
      %v2448 = vadd.f32 0.0, %v2447
      %v2449 = vpop.f32.mrb[0].mxu0
      %2450 = vmatprep.mubr.f32.mxu0 0.0
      %2451 = vmatmul.mubr.f32.gmra.mrb[0].mxu0 %v1680
      %v2452 = vpop.f32.mrb[0].mxu0
      %v2453 = vadd.f32 0.0, %v2452
      %v2454 = vpop.f32.mrb[0].mxu0
      %2455 = vmatprep.mubr.f32.mxu0 0.0
      %2456 = vmatmul.mubr.f32.gmra.mrb[0].mxu0 %v1682
      %v2457 = vpop.f32.mrb[0].mxu0
      %v2458 = vadd.f32 0.0, %v2457
      %v2459 = vpop.f32.mrb[0].mxu0
      %2460 = vmatprep.mubr.f32.mxu0 0.0
      %2461 = vmatmul.mubr.f32.gmra.mrb[0].mxu0 %v1684
      %v2462 = vpop.f32.mrb[0].mxu0
      %v2463 = vadd.f32 0.0, %v2462
      %v2464 = vpop.f32.mrb[0].mxu0
      %2465 = vmatprep.mubr.f32.mxu0 0.0
      %2466 = vmatmul.mubr.f32.gmra.mrb[0].mxu0 %v1686
      %v2467 = vpop.f32.mrb[0].mxu0
      %v2468 = vadd.f32 0.0, %v2467
      %v2469 = vpop.f32.mrb[0].mxu0
      %2470 = vmatprep.mubr.f32.mxu0 0.0
      %2471 = vmatmul.mubr.f32.gmra.mrb[0].mxu0 %v1688
      %v2472 = vpop.f32.mrb[0].mxu0
      %v2473 = vadd.f32 0.0, %v2472
      %v2474 = vpop.f32.mrb[0].mxu0
      %2475 = vmatprep.mubr.f32.mxu0 0.0
      %2476 = vmatmul.mubr.f32.gmra.mrb[0].mxu0 %v1690
      %v2477 = vpop.f32.mrb[0].mxu0
      %v2478 = vadd.f32 0.0, %v2477
      %v2479 = vpop.f32.mrb[0].mxu0
      %2480 = vmatprep.mubr.f32.mxu0 0.0
      %2481 = vmatmul.mubr.f32.gmra.mrb[0].mxu0 %v1692
      %v2482 = vpop.f32.mrb[0].mxu0
      %v2483 = vadd.f32 0.0, %v2482
      %v2484 = vpop.f32.mrb[0].mxu0
      %2485 = vmatprep.mubr.f32.mxu0 0.0
      %2486 = vmatmul.mubr.f32.gmra.mrb[0].mxu0 %v1694
      %v2487 = vpop.f32.mrb[0].mxu0
      %v2488 = vadd.f32 0.0, %v2487
      %v2489 = vpop.f32.mrb[0].mxu0
      %2490 = vmatprep.mubr.f32.mxu0 0.0
      %2491 = vmatmul.mubr.f32.gmra.mrb[0].mxu0 %v1696
      %v2492 = vpop.f32.mrb[0].mxu0
      %v2493 = vadd.f32 0.0, %v2492
      %v2494 = vpop.f32.mrb[0].mxu0
      %2495 = vmatprep.mubr.f32.mxu0 0.0
      %2496 = vmatmul.mubr.f32.gmra.mrb[0].mxu0 %v1698
      %v2497 = vpop.f32.mrb[0].mxu0
      %v2498 = vadd.f32 0.0, %v2497
      %v2499 = vpop.f32.mrb[0].mxu0
      %2500 = vmatprep.mubr.f32.mxu0 0.0
      %2501 = vmatmul.mubr.f32.gmra.mrb[0].mxu0 %v1701
      %v2502 = vpop.f32.mrb[0].mxu0
      %v2503 = vadd.f32 0.0, %v2502
      %v2504 = vpop.f32.mrb[0].mxu0
      %2505 = vmatprep.mubr.f32.mxu0 0.0
      %2506 = vmatmul.mubr.f32.gmra.mrb[0].mxu0 %v1704
      %v2507 = vpop.f32.mrb[0].mxu0
      %v2508 = vadd.f32 0.0, %v2507
      %v2509 = vpop.f32.mrb[0].mxu0
      %2510 = vmatprep.mubr.f32.mxu0 0.0
      %2511 = vmatmul.mubr.f32.gmra.mrb[0].mxu0 %v1707
      %v2512 = vpop.f32.mrb[0].mxu0
      %v2513 = vadd.f32 0.0, %v2512
      %v2514 = vpop.f32.mrb[0].mxu0
      %2515 = vmatprep.mubr.f32.mxu0 0.0
      %2516 = vmatmul.mubr.f32.gmra.mrb[0].mxu0 %v1710
      %v2517 = vpop.f32.mrb[0].mxu0
      %v2518 = vadd.f32 0.0, %v2517
      %v2519 = vpop.f32.mrb[0].mxu0
      %2520 = vmatprep.mubr.f32.mxu0 0.0
      %2521 = vmatmul.mubr.f32.gmra.mrb[0].mxu0 %v1713
      %v2522 = vpop.f32.mrb[0].mxu0
      %v2523 = vadd.f32 0.0, %v2522
      %v2524 = vpop.f32.mrb[0].mxu0
      %2525 = vmatprep.mubr.f32.mxu0 0.0
      %2526 = vmatmul.mubr.f32.gmra.mrb[0].mxu0 %v1716
      %v2527 = vpop.f32.mrb[0].mxu0
      %v2528 = vadd.f32 0.0, %v2527
      %v2529 = vpop.f32.mrb[0].mxu0
      %2530 = vmatprep.mubr.f32.mxu0 0.0
      %2531 = vmatmul.mubr.f32.gmra.mrb[0].mxu0 %v1719
      %v2532 = vpop.f32.mrb[0].mxu0
      %v2533 = vadd.f32 0.0, %v2532
      %v2534 = vpop.f32.mrb[0].mxu0
      %2535 = vmatprep.mubr.f32.mxu0 0.0
      %2536 = vmatmul.mubr.f32.gmra.mrb[0].mxu0 %v1722
      %v2537 = vpop.f32.mrb[0].mxu0
      %v2538 = vadd.f32 0.0, %v2537
      %v2539 = vpop.f32.mrb[0].mxu0
      %2540 = vmatprep.mubr.f32.mxu0 0.0
      %2541 = vmatmul.mubr.f32.gmra.mrb[0].mxu0 %v1725
      %v2542 = vpop.f32.mrb[0].mxu0
      %v2543 = vadd.f32 0.0, %v2542
      %v2544 = vpop.f32.mrb[0].mxu0
      %2545 = vmatprep.mubr.f32.mxu0 0.0
      %2546 = vmatmul.mubr.f32.gmra.mrb[0].mxu0 %v1728
      %v2547 = vpop.f32.mrb[0].mxu0
      %v2548 = vadd.f32 0.0, %v2547
      %v2549 = vpop.f32.mrb[0].mxu0
      %2550 = vmatprep.mubr.f32.mxu0 0.0
      %2551 = vmatmul.mubr.f32.gmra.mrb[0].mxu0 %v1731
      %v2552 = vpop.f32.mrb[0].mxu0
      %v2553 = vadd.f32 0.0, %v2552
      %v2554 = vpop.f32.mrb[0].mxu0
      %2555 = vmatprep.mubr.f32.mxu0 0.0
      %2556 = vmatmul.mubr.f32.gmra.mrb[0].mxu0 %v1734
      %v2557 = vpop.f32.mrb[0].mxu0
      %v2558 = vadd.f32 0.0, %v2557
      %v2559 = vpop.f32.mrb[0].mxu0
      %2560 = vmatprep.mubr.f32.mxu0 0.0
      %2561 = vmatmul.mubr.f32.gmra.mrb[0].mxu0 %v1737
      %v2562 = vpop.f32.mrb[0].mxu0
      %v2563 = vadd.f32 0.0, %v2562
      %v2564 = vpop.f32.mrb[0].mxu0
      %2565 = vmatprep.mubr.f32.mxu0 0.0
      %2566 = vmatmul.mubr.f32.gmra.mrb[0].mxu0 %v1740
      %v2567 = vpop.f32.mrb[0].mxu0
      %v2568 = vadd.f32 0.0, %v2567
      %v2569 = vpop.f32.mrb[0].mxu0
      %2570 = vmatprep.mubr.f32.mxu0 0.0
      %2571 = vmatmul.mubr.f32.gmra.mrb[0].mxu0 %v1743
      %v2572 = vpop.f32.mrb[0].mxu0
      %v2573 = vadd.f32 0.0, %v2572
      %v2574 = vpop.f32.mrb[0].mxu0
      %2575 = vmatprep.mubr.f32.mxu0 0.0
      %2576 = vmatmul.mubr.f32.gmra.mrb[0].mxu0 %v1746
      %v2577 = vpop.f32.mrb[0].mxu0
      %v2578 = vadd.f32 0.0, %v2577
      %v2579 = vpop.f32.mrb[0].mxu0
      %2580 = vmatprep.mubr.f32.mxu0 0.0
      %2581 = vmatmul.mubr.f32.gmra.mrb[0].mxu0 %v1749
      %v2582 = vpop.f32.mrb[0].mxu0
      %v2583 = vadd.f32 0.0, %v2582
      %v2584 = vpop.f32.mrb[0].mxu0
      %2585 = vmatprep.mubr.f32.mxu0 0.0
      %2586 = vmatmul.mubr.f32.gmra.mrb[0].mxu0 %v1752
      %v2587 = vpop.f32.mrb[0].mxu0
      %v2588 = vadd.f32 0.0, %v2587
      %v2589 = vpop.f32.mrb[0].mxu0
      %2590 = vmatprep.mubr.f32.mxu0 0.0
      %2591 = vmatmul.mubr.f32.gmra.mrb[0].mxu0 %v1755
      %v2592 = vpop.f32.mrb[0].mxu0
      %v2593 = vadd.f32 0.0, %v2592
      %v2594 = vpop.f32.mrb[0].mxu0
      %2595 = vmatprep.mubr.f32.mxu0 0.0
      %2596 = vmatmul.mubr.f32.gmra.mrb[0].mxu0 %v1758
      %v2597 = vpop.f32.mrb[0].mxu0
      %v2598 = vadd.f32 0.0, %v2597
      %v2599 = vpop.f32.mrb[0].mxu0
      %2600 = vmatprep.mubr.f32.mxu0 0.0
      %2601 = vmatmul.mubr.f32.gmra.mrb[0].mxu0 %v1761
      %v2602 = vpop.f32.mrb[0].mxu0
      %v2603 = vadd.f32 0.0, %v2602
      %v2604 = vpop.f32.mrb[0].mxu0
      %2605 = vmatprep.mubr.f32.mxu0 0.0
      %2606 = vmatmul.mubr.f32.gmra.mrb[0].mxu0 %v1764
      %v2607 = vpop.f32.mrb[0].mxu0
      %v2608 = vadd.f32 0.0, %v2607
      %v2609 = vpop.f32.mrb[0].mxu0
      %2610 = vmatprep.mubr.f32.mxu0 0.0
      %2611 = vmatmul.mubr.f32.gmra.mrb[0].mxu0 %v1767
      %v2612 = vpop.f32.mrb[0].mxu0
      %v2613 = vadd.f32 0.0, %v2612
      %v2614 = vpop.f32.mrb[0].mxu0
      %2615 = vmatprep.mubr.f32.mxu0 0.0
      %2616 = vmatmul.mubr.f32.gmra.mrb[0].mxu0 %v1770
      %v2617 = vpop.f32.mrb[0].mxu0
      %v2618 = vadd.f32 0.0, %v2617
      %v2619 = vpop.f32.mrb[0].mxu0
      %2620 = vmatprep.mubr.f32.mxu0 0.0
      %2621 = vmatmul.mubr.f32.gmra.mrb[0].mxu0 %v1773
      %v2622 = vpop.f32.mrb[0].mxu0
      %v2623 = vadd.f32 0.0, %v2622
      %v2624 = vpop.f32.mrb[0].mxu0
      %2625 = vmatprep.mubr.f32.mxu0 0.0
      %2626 = vmatmul.mubr.f32.gmra.mrb[0].mxu0 %v1776
      %v2627 = vpop.f32.mrb[0].mxu0
      %v2628 = vadd.f32 0.0, %v2627
      %v2629 = vpop.f32.mrb[0].mxu0
      %2630 = vmatprep.mubr.f32.mxu0 0.0
      %2631 = vmatmul.mubr.f32.gmra.mrb[0].mxu0 %v1779
      %v2632 = vpop.f32.mrb[0].mxu0
      %v2633 = vadd.f32 0.0, %v2632
      %v2634 = vpop.f32.mrb[0].mxu0
      %2635 = vmatprep.mubr.f32.mxu0 0.0
      %2636 = vmatmul.mubr.f32.gmra.mrb[0].mxu0 %v1782
      %v2637 = vpop.f32.mrb[0].mxu0
      %v2638 = vadd.f32 0.0, %v2637
      %v2639 = vpop.f32.mrb[0].mxu0
      %2640 = vmatprep.mubr.f32.mxu0 0.0
      %2641 = vmatmul.mubr.f32.gmra.mrb[0].mxu0 %v1785
      %v2642 = vpop.f32.mrb[0].mxu0
      %v2643 = vadd.f32 0.0, %v2642
      %v2644 = vpop.f32.mrb[0].mxu0
      %2645 = vmatprep.mubr.f32.mxu0 0.0
      %2646 = vmatmul.mubr.f32.gmra.mrb[0].mxu0 %v1788
      %v2647 = vpop.f32.mrb[0].mxu0
      %v2648 = vadd.f32 0.0, %v2647
      %v2649 = vpop.f32.mrb[0].mxu0
      %2650 = vmatprep.mubr.f32.mxu0 0.0
      %2651 = vmatmul.mubr.f32.gmra.mrb[0].mxu0 %v1791
      %v2652 = vpop.f32.mrb[0].mxu0
      %v2653 = vadd.f32 0.0, %v2652
      %v2654 = vpop.f32.mrb[0].mxu0
      %2655 = vmatprep.mubr.f32.mxu0 0.0
      %2656 = vmatmul.mubr.f32.gmra.mrb[0].mxu0 %v1794
      %v2657 = vpop.f32.mrb[0].mxu0
      %v2658 = vadd.f32 0.0, %v2657
      %v2659 = vpop.f32.mrb[0].mxu0
      %2660 = vdwg.mxu0
      %v2661 = vmul.f32 %v1863, %v1863
      %v2662 = vmul.f32 %v1868, %v1868
      %v2663 = vmul.f32 %v1873, %v1873
      %v2664 = vmul.f32 %v1878, %v1878
      %v2665 = vmul.f32 %v1883, %v1883
      %v2666 = vmul.f32 %v1888, %v1888
      %v2667 = vmul.f32 %v1893, %v1893
      %v2668 = vmul.f32 %v1898, %v1898
      %v2669 = vmul.f32 %v1903, %v1903
      %v2670 = vmul.f32 %v1908, %v1908
      %v2671 = vmul.f32 %v1913, %v1913
      %v2672 = vmul.f32 %v1918, %v1918
      %v2673 = vmul.f32 %v1923, %v1923
      %v2674 = vmul.f32 %v1928, %v1928
      %v2675 = vmul.f32 %v1933, %v1933
      %v2676 = vmul.f32 %v1938, %v1938
      %v2677 = vmul.f32 %v1943, %v1943
      %v2678 = vmul.f32 %v1948, %v1948
      %v2679 = vmul.f32 %v1953, %v1953
      %v2680 = vmul.f32 %v1958, %v1958
      %v2681 = vmul.f32 %v1963, %v1963
      %v2682 = vmul.f32 %v1968, %v1968
      %v2683 = vmul.f32 %v1973, %v1973
      %v2684 = vmul.f32 %v1978, %v1978
      %v2685 = vmul.f32 %v1983, %v1983
      %v2686 = vmul.f32 %v1988, %v1988
      %v2687 = vmul.f32 %v1993, %v1993
      %v2688 = vmul.f32 %v1998, %v1998
      %v2689 = vmul.f32 %v2003, %v2003
      %v2690 = vmul.f32 %v2008, %v2008
      %v2691 = vmul.f32 %v2013, %v2013
      %v2692 = vmul.f32 %v2018, %v2018
      %v2693 = vmul.f32 %v2023, %v2023
      %v2694 = vmul.f32 %v2028, %v2028
      %v2695 = vmul.f32 %v2033, %v2033
      %v2696 = vmul.f32 %v2038, %v2038
      %v2697 = vmul.f32 %v2043, %v2043
      %v2698 = vmul.f32 %v2048, %v2048
      %v2699 = vmul.f32 %v2053, %v2053
      %v2700 = vmul.f32 %v2058, %v2058
      %v2701 = vmul.f32 %v2063, %v2063
      %v2702 = vmul.f32 %v2068, %v2068
      %v2703 = vmul.f32 %v2073, %v2073
      %v2704 = vmul.f32 %v2078, %v2078
      %v2705 = vmul.f32 %v2083, %v2083
      %v2706 = vmul.f32 %v2088, %v2088
      %v2707 = vmul.f32 %v2093, %v2093
      %v2708 = vmul.f32 %v2098, %v2098
      %v2709 = vmul.f32 %v2103, %v2103
      %v2710 = vmul.f32 %v2108, %v2108
      %v2711 = vmul.f32 %v2113, %v2113
      %v2712 = vmul.f32 %v2118, %v2118
      %v2713 = vmul.f32 %v2123, %v2123
      %v2714 = vmul.f32 %v2128, %v2128
      %v2715 = vmul.f32 %v2133, %v2133
      %v2716 = vmul.f32 %v2138, %v2138
      %v2717 = vmul.f32 %v2143, %v2143
      %v2718 = vmul.f32 %v2148, %v2148
      %v2719 = vmul.f32 %v2153, %v2153
      %v2720 = vmul.f32 %v2158, %v2158
      %v2721 = vmul.f32 %v2163, %v2163
      %v2722 = vmul.f32 %v2168, %v2168
      %v2723 = vmul.f32 %v2173, %v2173
      %v2724 = vmul.f32 %v2178, %v2178
      %v2725 = vmul.f32 %v1863, %v2023
      %v2726 = vmul.f32 %v1868, %v2028
      %v2727 = vmul.f32 %v1873, %v2033
      %v2728 = vmul.f32 %v1878, %v2038
      %v2729 = vmul.f32 %v1883, %v2043
      %v2730 = vmul.f32 %v1888, %v2048
      %v2731 = vmul.f32 %v1893, %v2053
      %v2732 = vmul.f32 %v1898, %v2058
      %v2733 = vmul.f32 %v1903, %v2063
      %v2734 = vmul.f32 %v1908, %v2068
      %v2735 = vmul.f32 %v1913, %v2073
      %v2736 = vmul.f32 %v1918, %v2078
      %v2737 = vmul.f32 %v1923, %v2083
      %v2738 = vmul.f32 %v1928, %v2088
      %v2739 = vmul.f32 %v1933, %v2093
      %v2740 = vmul.f32 %v1938, %v2098
      %v2741 = vmul.f32 %v1943, %v2103
      %v2742 = vmul.f32 %v1948, %v2108
      %v2743 = vmul.f32 %v1953, %v2113
      %v2744 = vmul.f32 %v1958, %v2118
      %v2745 = vmul.f32 %v1963, %v2123
      %v2746 = vmul.f32 %v1968, %v2128
      %v2747 = vmul.f32 %v1973, %v2133
      %v2748 = vmul.f32 %v1978, %v2138
      %v2749 = vmul.f32 %v1983, %v2143
      %v2750 = vmul.f32 %v1988, %v2148
      %v2751 = vmul.f32 %v1993, %v2153
      %v2752 = vmul.f32 %v1998, %v2158
      %v2753 = vmul.f32 %v2003, %v2163
      %v2754 = vmul.f32 %v2008, %v2168
      %v2755 = vmul.f32 %v2013, %v2173
      %v2756 = vmul.f32 %v2018, %v2178
      %v2757 = vsub.f32 %v2183, %v2661
      %v2758 = vsub.f32 %v2188, %v2662
      %v2759 = vsub.f32 %v2193, %v2663
      %v2760 = vsub.f32 %v2198, %v2664
      %v2761 = vsub.f32 %v2203, %v2665
      %v2762 = vsub.f32 %v2208, %v2666
      %v2763 = vsub.f32 %v2213, %v2667
      %v2764 = vsub.f32 %v2218, %v2668
      %v2765 = vsub.f32 %v2223, %v2669
      %v2766 = vsub.f32 %v2228, %v2670
      %v2767 = vsub.f32 %v2233, %v2671
      %v2768 = vsub.f32 %v2238, %v2672
      %v2769 = vsub.f32 %v2243, %v2673
      %v2770 = vsub.f32 %v2248, %v2674
      %v2771 = vsub.f32 %v2253, %v2675
      %v2772 = vsub.f32 %v2258, %v2676
      %v2773 = vsub.f32 %v2263, %v2677
      %v2774 = vsub.f32 %v2268, %v2678
      %v2775 = vsub.f32 %v2273, %v2679
      %v2776 = vsub.f32 %v2278, %v2680
      %v2777 = vsub.f32 %v2283, %v2681
      %v2778 = vsub.f32 %v2288, %v2682
      %v2779 = vsub.f32 %v2293, %v2683
      %v2780 = vsub.f32 %v2298, %v2684
      %v2781 = vsub.f32 %v2303, %v2685
      %v2782 = vsub.f32 %v2308, %v2686
      %v2783 = vsub.f32 %v2313, %v2687
      %v2784 = vsub.f32 %v2318, %v2688
      %v2785 = vsub.f32 %v2323, %v2689
      %v2786 = vsub.f32 %v2328, %v2690
      %v2787 = vsub.f32 %v2333, %v2691
      %v2788 = vsub.f32 %v2338, %v2692
      %v2789 = vsub.f32 %v2343, %v2693
      %v2790 = vsub.f32 %v2348, %v2694
      %v2791 = vsub.f32 %v2353, %v2695
      %v2792 = vsub.f32 %v2358, %v2696
      %v2793 = vsub.f32 %v2363, %v2697
      %v2794 = vsub.f32 %v2368, %v2698
      %v2795 = vsub.f32 %v2373, %v2699
      %v2796 = vsub.f32 %v2378, %v2700
      %v2797 = vsub.f32 %v2383, %v2701
      %v2798 = vsub.f32 %v2388, %v2702
      %v2799 = vsub.f32 %v2393, %v2703
      %v2800 = vsub.f32 %v2398, %v2704
      %v2801 = vsub.f32 %v2403, %v2705
      %v2802 = vsub.f32 %v2408, %v2706
      %v2803 = vsub.f32 %v2413, %v2707
      %v2804 = vsub.f32 %v2418, %v2708
      %v2805 = vsub.f32 %v2423, %v2709
      %v2806 = vsub.f32 %v2428, %v2710
      %v2807 = vsub.f32 %v2433, %v2711
      %v2808 = vsub.f32 %v2438, %v2712
      %v2809 = vsub.f32 %v2443, %v2713
      %v2810 = vsub.f32 %v2448, %v2714
      %v2811 = vsub.f32 %v2453, %v2715
      %v2812 = vsub.f32 %v2458, %v2716
      %v2813 = vsub.f32 %v2463, %v2717
      %v2814 = vsub.f32 %v2468, %v2718
      %v2815 = vsub.f32 %v2473, %v2719
      %v2816 = vsub.f32 %v2478, %v2720
      %v2817 = vsub.f32 %v2483, %v2721
      %v2818 = vsub.f32 %v2488, %v2722
      %v2819 = vsub.f32 %v2493, %v2723
      %v2820 = vsub.f32 %v2498, %v2724
      %v2821 = vsub.f32 %v2503, %v2725
      %v2822 = vsub.f32 %v2508, %v2726
      %v2823 = vsub.f32 %v2513, %v2727
      %v2824 = vsub.f32 %v2518, %v2728
      %v2825 = vsub.f32 %v2523, %v2729
      %v2826 = vsub.f32 %v2528, %v2730
      %v2827 = vsub.f32 %v2533, %v2731
      %v2828 = vsub.f32 %v2538, %v2732
      %v2829 = vsub.f32 %v2543, %v2733
      %v2830 = vsub.f32 %v2548, %v2734
      %v2831 = vsub.f32 %v2553, %v2735
      %v2832 = vsub.f32 %v2558, %v2736
      %v2833 = vsub.f32 %v2563, %v2737
      %v2834 = vsub.f32 %v2568, %v2738
      %v2835 = vsub.f32 %v2573, %v2739
      %v2836 = vsub.f32 %v2578, %v2740
      %v2837 = vsub.f32 %v2583, %v2741
      %v2838 = vsub.f32 %v2588, %v2742
      %v2839 = vsub.f32 %v2593, %v2743
      %v2840 = vsub.f32 %v2598, %v2744
      %v2841 = vsub.f32 %v2603, %v2745
      %v2842 = vsub.f32 %v2608, %v2746
      %v2843 = vsub.f32 %v2613, %v2747
      %v2844 = vsub.f32 %v2618, %v2748
      %v2845 = vsub.f32 %v2623, %v2749
      %v2846 = vsub.f32 %v2628, %v2750
      %v2847 = vsub.f32 %v2633, %v2751
      %v2848 = vsub.f32 %v2638, %v2752
      %v2849 = vsub.f32 %v2643, %v2753
      %v2850 = vsub.f32 %v2648, %v2754
      %v2851 = vsub.f32 %v2653, %v2755
      %v2852 = vsub.f32 %v2658, %v2756
      %v2853 = vmul.f32 %v2725, 2.0
      %v2854 = vmul.f32 %v2726, 2.0
      %v2855 = vmul.f32 %v2727, 2.0
      %v2856 = vmul.f32 %v2728, 2.0
      %v2857 = vmul.f32 %v2729, 2.0
      %v2858 = vmul.f32 %v2730, 2.0
      %v2859 = vmul.f32 %v2731, 2.0
      %v2860 = vmul.f32 %v2732, 2.0
      %v2861 = vmul.f32 %v2733, 2.0
      %v2862 = vmul.f32 %v2734, 2.0
      %v2863 = vmul.f32 %v2735, 2.0
      %v2864 = vmul.f32 %v2736, 2.0
      %v2865 = vmul.f32 %v2737, 2.0
      %v2866 = vmul.f32 %v2738, 2.0
      %v2867 = vmul.f32 %v2739, 2.0
      %v2868 = vmul.f32 %v2740, 2.0
      %v2869 = vmul.f32 %v2741, 2.0
      %v2870 = vmul.f32 %v2742, 2.0
      %v2871 = vmul.f32 %v2743, 2.0
      %v2872 = vmul.f32 %v2744, 2.0
      %v2873 = vmul.f32 %v2745, 2.0
      %v2874 = vmul.f32 %v2746, 2.0
      %v2875 = vmul.f32 %v2747, 2.0
      %v2876 = vmul.f32 %v2748, 2.0
      %v2877 = vmul.f32 %v2749, 2.0
      %v2878 = vmul.f32 %v2750, 2.0
      %v2879 = vmul.f32 %v2751, 2.0
      %v2880 = vmul.f32 %v2752, 2.0
      %v2881 = vmul.f32 %v2753, 2.0
      %v2882 = vmul.f32 %v2754, 2.0
      %v2883 = vmul.f32 %v2755, 2.0
      %v2884 = vmul.f32 %v2756, 2.0
      %v2885 = vadd.f32 %v2853, 0.0001
      %v2886 = vadd.f32 %v2854, 0.0001
      %v2887 = vadd.f32 %v2855, 0.0001
      %v2888 = vadd.f32 %v2856, 0.0001
      %v2889 = vadd.f32 %v2857, 0.0001
      %v2890 = vadd.f32 %v2858, 0.0001
      %v2891 = vadd.f32 %v2859, 0.0001
      %v2892 = vadd.f32 %v2860, 0.0001
      %v2893 = vadd.f32 %v2861, 0.0001
      %v2894 = vadd.f32 %v2862, 0.0001
      %v2895 = vadd.f32 %v2863, 0.0001
      %v2896 = vadd.f32 %v2864, 0.0001
      %v2897 = vadd.f32 %v2865, 0.0001
      %v2898 = vadd.f32 %v2866, 0.0001
      %v2899 = vadd.f32 %v2867, 0.0001
      %v2900 = vadd.f32 %v2868, 0.0001
      %v2901 = vadd.f32 %v2869, 0.0001
      %v2902 = vadd.f32 %v2870, 0.0001
      %v2903 = vadd.f32 %v2871, 0.0001
      %v2904 = vadd.f32 %v2872, 0.0001
      %v2905 = vadd.f32 %v2873, 0.0001
      %v2906 = vadd.f32 %v2874, 0.0001
      %v2907 = vadd.f32 %v2875, 0.0001
      %v2908 = vadd.f32 %v2876, 0.0001
      %v2909 = vadd.f32 %v2877, 0.0001
      %v2910 = vadd.f32 %v2878, 0.0001
      %v2911 = vadd.f32 %v2879, 0.0001
      %v2912 = vadd.f32 %v2880, 0.0001
      %v2913 = vadd.f32 %v2881, 0.0001
      %v2914 = vadd.f32 %v2882, 0.0001
      %v2915 = vadd.f32 %v2883, 0.0001
      %v2916 = vadd.f32 %v2884, 0.0001
      %v2917 = vmul.f32 %v2821, 2.0
      %v2918 = vmul.f32 %v2822, 2.0
      %v2919 = vmul.f32 %v2823, 2.0
      %v2920 = vmul.f32 %v2824, 2.0
      %v2921 = vmul.f32 %v2825, 2.0
      %v2922 = vmul.f32 %v2826, 2.0
      %v2923 = vmul.f32 %v2827, 2.0
      %v2924 = vmul.f32 %v2828, 2.0
      %v2925 = vmul.f32 %v2829, 2.0
      %v2926 = vmul.f32 %v2830, 2.0
      %v2927 = vmul.f32 %v2831, 2.0
      %v2928 = vmul.f32 %v2832, 2.0
      %v2929 = vmul.f32 %v2833, 2.0
      %v2930 = vmul.f32 %v2834, 2.0
      %v2931 = vmul.f32 %v2835, 2.0
      %v2932 = vmul.f32 %v2836, 2.0
      %v2933 = vmul.f32 %v2837, 2.0
      %v2934 = vmul.f32 %v2838, 2.0
      %v2935 = vmul.f32 %v2839, 2.0
      %v2936 = vmul.f32 %v2840, 2.0
      %v2937 = vmul.f32 %v2841, 2.0
      %v2938 = vmul.f32 %v2842, 2.0
      %v2939 = vmul.f32 %v2843, 2.0
      %v2940 = vmul.f32 %v2844, 2.0
      %v2941 = vmul.f32 %v2845, 2.0
      %v2942 = vmul.f32 %v2846, 2.0
      %v2943 = vmul.f32 %v2847, 2.0
      %v2944 = vmul.f32 %v2848, 2.0
      %v2945 = vmul.f32 %v2849, 2.0
      %v2946 = vmul.f32 %v2850, 2.0
      %v2947 = vmul.f32 %v2851, 2.0
      %v2948 = vmul.f32 %v2852, 2.0
      %v2949 = vadd.f32 %v2917, 0.0009
      %v2950 = vadd.f32 %v2918, 0.0009
      %v2951 = vadd.f32 %v2919, 0.0009
      %v2952 = vadd.f32 %v2920, 0.0009
      %v2953 = vadd.f32 %v2921, 0.0009
      %v2954 = vadd.f32 %v2922, 0.0009
      %v2955 = vadd.f32 %v2923, 0.0009
      %v2956 = vadd.f32 %v2924, 0.0009
      %v2957 = vadd.f32 %v2925, 0.0009
      %v2958 = vadd.f32 %v2926, 0.0009
      %v2959 = vadd.f32 %v2927, 0.0009
      %v2960 = vadd.f32 %v2928, 0.0009
      %v2961 = vadd.f32 %v2929, 0.0009
      %v2962 = vadd.f32 %v2930, 0.0009
      %v2963 = vadd.f32 %v2931, 0.0009
      %v2964 = vadd.f32 %v2932, 0.0009
      %v2965 = vadd.f32 %v2933, 0.0009
      %v2966 = vadd.f32 %v2934, 0.0009
      %v2967 = vadd.f32 %v2935, 0.0009
      %v2968 = vadd.f32 %v2936, 0.0009
      %v2969 = vadd.f32 %v2937, 0.0009
      %v2970 = vadd.f32 %v2938, 0.0009
      %v2971 = vadd.f32 %v2939, 0.0009
      %v2972 = vadd.f32 %v2940, 0.0009
      %v2973 = vadd.f32 %v2941, 0.0009
      %v2974 = vadd.f32 %v2942, 0.0009
      %v2975 = vadd.f32 %v2943, 0.0009
      %v2976 = vadd.f32 %v2944, 0.0009
      %v2977 = vadd.f32 %v2945, 0.0009
      %v2978 = vadd.f32 %v2946, 0.0009
      %v2979 = vadd.f32 %v2947, 0.0009
      %v2980 = vadd.f32 %v2948, 0.0009
      %v2981 = vmul.f32 %v2885, %v2949
      %v2982 = vmul.f32 %v2886, %v2950
      %v2983 = vmul.f32 %v2887, %v2951
      %v2984 = vmul.f32 %v2888, %v2952
      %v2985 = vmul.f32 %v2889, %v2953
      %v2986 = vmul.f32 %v2890, %v2954
      %v2987 = vmul.f32 %v2891, %v2955
      %v2988 = vmul.f32 %v2892, %v2956
      %v2989 = vmul.f32 %v2893, %v2957
      %v2990 = vmul.f32 %v2894, %v2958
      %v2991 = vmul.f32 %v2895, %v2959
      %v2992 = vmul.f32 %v2896, %v2960
      %v2993 = vmul.f32 %v2897, %v2961
      %v2994 = vmul.f32 %v2898, %v2962
      %v2995 = vmul.f32 %v2899, %v2963
      %v2996 = vmul.f32 %v2900, %v2964
      %v2997 = vmul.f32 %v2901, %v2965
      %v2998 = vmul.f32 %v2902, %v2966
      %v2999 = vmul.f32 %v2903, %v2967
      %v3000 = vmul.f32 %v2904, %v2968
      %v3001 = vmul.f32 %v2905, %v2969
      %v3002 = vmul.f32 %v2906, %v2970
      %v3003 = vmul.f32 %v2907, %v2971
      %v3004 = vmul.f32 %v2908, %v2972
      %v3005 = vmul.f32 %v2909, %v2973
      %v3006 = vmul.f32 %v2910, %v2974
      %v3007 = vmul.f32 %v2911, %v2975
      %v3008 = vmul.f32 %v2912, %v2976
      %v3009 = vmul.f32 %v2913, %v2977
      %v3010 = vmul.f32 %v2914, %v2978
      %v3011 = vmul.f32 %v2915, %v2979
      %v3012 = vmul.f32 %v2916, %v2980
      %v3013 = vadd.f32 %v2661, %v2693
      %v3014 = vadd.f32 %v2662, %v2694
      %v3015 = vadd.f32 %v2663, %v2695
      %v3016 = vadd.f32 %v2664, %v2696
      %v3017 = vadd.f32 %v2665, %v2697
      %v3018 = vadd.f32 %v2666, %v2698
      %v3019 = vadd.f32 %v2667, %v2699
      %v3020 = vadd.f32 %v2668, %v2700
      %v3021 = vadd.f32 %v2669, %v2701
      %v3022 = vadd.f32 %v2670, %v2702
      %v3023 = vadd.f32 %v2671, %v2703
      %v3024 = vadd.f32 %v2672, %v2704
      %v3025 = vadd.f32 %v2673, %v2705
      %v3026 = vadd.f32 %v2674, %v2706
      %v3027 = vadd.f32 %v2675, %v2707
      %v3028 = vadd.f32 %v2676, %v2708
      %v3029 = vadd.f32 %v2677, %v2709
      %v3030 = vadd.f32 %v2678, %v2710
      %v3031 = vadd.f32 %v2679, %v2711
      %v3032 = vadd.f32 %v2680, %v2712
      %v3033 = vadd.f32 %v2681, %v2713
      %v3034 = vadd.f32 %v2682, %v2714
      %v3035 = vadd.f32 %v2683, %v2715
      %v3036 = vadd.f32 %v2684, %v2716
      %v3037 = vadd.f32 %v2685, %v2717
      %v3038 = vadd.f32 %v2686, %v2718
      %v3039 = vadd.f32 %v2687, %v2719
      %v3040 = vadd.f32 %v2688, %v2720
      %v3041 = vadd.f32 %v2689, %v2721
      %v3042 = vadd.f32 %v2690, %v2722
      %v3043 = vadd.f32 %v2691, %v2723
      %v3044 = vadd.f32 %v2692, %v2724
      %v3045 = vadd.f32 %v3013, 0.0001
      %v3046 = vadd.f32 %v3014, 0.0001
      %v3047 = vadd.f32 %v3015, 0.0001
      %v3048 = vadd.f32 %v3016, 0.0001
      %v3049 = vadd.f32 %v3017, 0.0001
      %v3050 = vadd.f32 %v3018, 0.0001
      %v3051 = vadd.f32 %v3019, 0.0001
      %v3052 = vadd.f32 %v3020, 0.0001
      %v3053 = vadd.f32 %v3021, 0.0001
      %v3054 = vadd.f32 %v3022, 0.0001
      %v3055 = vadd.f32 %v3023, 0.0001
      %v3056 = vadd.f32 %v3024, 0.0001
      %v3057 = vadd.f32 %v3025, 0.0001
      %v3058 = vadd.f32 %v3026, 0.0001
      %v3059 = vadd.f32 %v3027, 0.0001
      %v3060 = vadd.f32 %v3028, 0.0001
      %v3061 = vadd.f32 %v3029, 0.0001
      %v3062 = vadd.f32 %v3030, 0.0001
      %v3063 = vadd.f32 %v3031, 0.0001
      %v3064 = vadd.f32 %v3032, 0.0001
      %v3065 = vadd.f32 %v3033, 0.0001
      %v3066 = vadd.f32 %v3034, 0.0001
      %v3067 = vadd.f32 %v3035, 0.0001
      %v3068 = vadd.f32 %v3036, 0.0001
      %v3069 = vadd.f32 %v3037, 0.0001
      %v3070 = vadd.f32 %v3038, 0.0001
      %v3071 = vadd.f32 %v3039, 0.0001
      %v3072 = vadd.f32 %v3040, 0.0001
      %v3073 = vadd.f32 %v3041, 0.0001
      %v3074 = vadd.f32 %v3042, 0.0001
      %v3075 = vadd.f32 %v3043, 0.0001
      %v3076 = vadd.f32 %v3044, 0.0001
      %v3077 = vadd.f32 %v2757, %v2789
      %v3078 = vadd.f32 %v2758, %v2790
      %v3079 = vadd.f32 %v2759, %v2791
      %v3080 = vadd.f32 %v2760, %v2792
      %v3081 = vadd.f32 %v2761, %v2793
      %v3082 = vadd.f32 %v2762, %v2794
      %v3083 = vadd.f32 %v2763, %v2795
      %v3084 = vadd.f32 %v2764, %v2796
      %v3085 = vadd.f32 %v2765, %v2797
      %v3086 = vadd.f32 %v2766, %v2798
      %v3087 = vadd.f32 %v2767, %v2799
      %v3088 = vadd.f32 %v2768, %v2800
      %v3089 = vadd.f32 %v2769, %v2801
      %v3090 = vadd.f32 %v2770, %v2802
      %v3091 = vadd.f32 %v2771, %v2803
      %v3092 = vadd.f32 %v2772, %v2804
      %v3093 = vadd.f32 %v2773, %v2805
      %v3094 = vadd.f32 %v2774, %v2806
      %v3095 = vadd.f32 %v2775, %v2807
      %v3096 = vadd.f32 %v2776, %v2808
      %v3097 = vadd.f32 %v2777, %v2809
      %v3098 = vadd.f32 %v2778, %v2810
      %v3099 = vadd.f32 %v2779, %v2811
      %v3100 = vadd.f32 %v2780, %v2812
      %v3101 = vadd.f32 %v2781, %v2813
      %v3102 = vadd.f32 %v2782, %v2814
      %v3103 = vadd.f32 %v2783, %v2815
      %v3104 = vadd.f32 %v2784, %v2816
      %v3105 = vadd.f32 %v2785, %v2817
      %v3106 = vadd.f32 %v2786, %v2818
      %v3107 = vadd.f32 %v2787, %v2819
      %v3108 = vadd.f32 %v2788, %v2820
      %v3109 = vadd.f32 %v3077, 0.0009
      %v3110 = vadd.f32 %v3078, 0.0009
      %v3111 = vadd.f32 %v3079, 0.0009
      %v3112 = vadd.f32 %v3080, 0.0009
      %v3113 = vadd.f32 %v3081, 0.0009
      %v3114 = vadd.f32 %v3082, 0.0009
      %v3115 = vadd.f32 %v3083, 0.0009
      %v3116 = vadd.f32 %v3084, 0.0009
      %v3117 = vadd.f32 %v3085, 0.0009
      %v3118 = vadd.f32 %v3086, 0.0009
      %v3119 = vadd.f32 %v3087, 0.0009
      %v3120 = vadd.f32 %v3088, 0.0009
      %v3121 = vadd.f32 %v3089, 0.0009
      %v3122 = vadd.f32 %v3090, 0.0009
      %v3123 = vadd.f32 %v3091, 0.0009
      %v3124 = vadd.f32 %v3092, 0.0009
      %v3125 = vadd.f32 %v3093, 0.0009
      %v3126 = vadd.f32 %v3094, 0.0009
      %v3127 = vadd.f32 %v3095, 0.0009
      %v3128 = vadd.f32 %v3096, 0.0009
      %v3129 = vadd.f32 %v3097, 0.0009
      %v3130 = vadd.f32 %v3098, 0.0009
      %v3131 = vadd.f32 %v3099, 0.0009
      %v3132 = vadd.f32 %v3100, 0.0009
      %v3133 = vadd.f32 %v3101, 0.0009
      %v3134 = vadd.f32 %v3102, 0.0009
      %v3135 = vadd.f32 %v3103, 0.0009
      %v3136 = vadd.f32 %v3104, 0.0009
      %v3137 = vadd.f32 %v3105, 0.0009
      %v3138 = vadd.f32 %v3106, 0.0009
      %v3139 = vadd.f32 %v3107, 0.0009
      %v3140 = vadd.f32 %v3108, 0.0009
      %v3141 = vmul.f32 %v3045, %v3109
      %v3142 = vmul.f32 %v3046, %v3110
      %v3143 = vmul.f32 %v3047, %v3111
      %v3144 = vmul.f32 %v3048, %v3112
      %v3145 = vmul.f32 %v3049, %v3113
      %v3146 = vmul.f32 %v3050, %v3114
      %v3147 = vmul.f32 %v3051, %v3115
      %v3148 = vmul.f32 %v3052, %v3116
      %v3149 = vmul.f32 %v3053, %v3117
      %v3150 = vmul.f32 %v3054, %v3118
      %v3151 = vmul.f32 %v3055, %v3119
      %v3152 = vmul.f32 %v3056, %v3120
      %v3153 = vmul.f32 %v3057, %v3121
      %v3154 = vmul.f32 %v3058, %v3122
      %v3155 = vmul.f32 %v3059, %v3123
      %v3156 = vmul.f32 %v3060, %v3124
      %v3157 = vmul.f32 %v3061, %v3125
      %v3158 = vmul.f32 %v3062, %v3126
      %v3159 = vmul.f32 %v3063, %v3127
      %v3160 = vmul.f32 %v3064, %v3128
      %v3161 = vmul.f32 %v3065, %v3129
      %v3162 = vmul.f32 %v3066, %v3130
      %v3163 = vmul.f32 %v3067, %v3131
      %v3164 = vmul.f32 %v3068, %v3132
      %v3165 = vmul.f32 %v3069, %v3133
      %v3166 = vmul.f32 %v3070, %v3134
      %v3167 = vmul.f32 %v3071, %v3135
      %v3168 = vmul.f32 %v3072, %v3136
      %v3169 = vmul.f32 %v3073, %v3137
      %v3170 = vmul.f32 %v3074, %v3138
      %v3171 = vmul.f32 %v3075, %v3139
      %v3172 = vmul.f32 %v3076, %v3140
      %v3173 = vrcp.pop %v3141
      %v3174 = vrcp.pop %v3142
      %v3175 = vrcp.pop %v3143
      %v3176 = vrcp.pop %v3144
      %v3177 = vrcp.pop %v3145
      %v3178 = vrcp.pop %v3146
      %v3179 = vrcp.pop %v3147
      %v3180 = vrcp.pop %v3148
      %v3181 = vrcp.pop %v3149
      %v3182 = vrcp.pop %v3150
      %v3183 = vrcp.pop %v3151
      %v3184 = vrcp.pop %v3152
      %v3185 = vrcp.pop %v3153
      %v3186 = vrcp.pop %v3154
      %v3187 = vrcp.pop %v3155
      %v3188 = vrcp.pop %v3156
      %v3189 = vrcp.pop %v3157
      %v3190 = vrcp.pop %v3158
      %v3191 = vrcp.pop %v3159
      %v3192 = vrcp.pop %v3160
      %v3193 = vrcp.pop %v3161
      %v3194 = vrcp.pop %v3162
      %v3195 = vrcp.pop %v3163
      %v3196 = vrcp.pop %v3164
      %v3197 = vrcp.pop %v3165
      %v3198 = vrcp.pop %v3166
      %v3199 = vrcp.pop %v3167
      %v3200 = vrcp.pop %v3168
      %v3201 = vrcp.pop %v3169
      %v3202 = vrcp.pop %v3170
      %v3203 = vrcp.pop %v3171
      %v3204 = vrcp.pop %v3172
      %v3205 = vmul.f32 %v2981, %v3173
      %v3206 = vmul.f32 %v2982, %v3174
      %v3207 = vmul.f32 %v2983, %v3175
      %v3208 = vmul.f32 %v2984, %v3176
      %v3209 = vmul.f32 %v2985, %v3177
      %v3210 = vmul.f32 %v2986, %v3178
      %v3211 = vmul.f32 %v2987, %v3179
      %v3212 = vmul.f32 %v2988, %v3180
      %v3213 = vmul.f32 %v2989, %v3181
      %v3214 = vmul.f32 %v2990, %v3182
      %v3215 = vmul.f32 %v2991, %v3183
      %v3216 = vmul.f32 %v2992, %v3184
      %v3217 = vmul.f32 %v2993, %v3185
      %v3218 = vmul.f32 %v2994, %v3186
      %v3219 = vmul.f32 %v2995, %v3187
      %v3220 = vmul.f32 %v2996, %v3188
      %v3221 = vmul.f32 %v2997, %v3189
      %v3222 = vmul.f32 %v2998, %v3190
      %v3223 = vmul.f32 %v2999, %v3191
      %v3224 = vmul.f32 %v3000, %v3192
      %v3225 = vmul.f32 %v3001, %v3193
      %v3226 = vmul.f32 %v3002, %v3194
      %v3227 = vmul.f32 %v3003, %v3195
      %v3228 = vmul.f32 %v3004, %v3196
      %v3229 = vmul.f32 %v3005, %v3197
      %v3230 = vmul.f32 %v3006, %v3198
      %v3231 = vmul.f32 %v3007, %v3199
      %v3232 = vmul.f32 %v3008, %v3200
      %v3233 = vmul.f32 %v3009, %v3201
      %v3234 = vmul.f32 %v3010, %v3202
      %v3235 = vmul.f32 %v3011, %v3203
      %v3236 = vmul.f32 %v3012, %v3204
      %v3237 = vsel %vm864, %v3205, 0.0
      %v3238 = vsel %vm864, %v3206, 0.0
      %v3239 = vadd.f32 %v3237, %v3238
      %v3240 = vsel %vm864, %v3207, 0.0
      %v3241 = vadd.f32 %v3239, %v3240
      %v3242 = vsel %vm864, %v3208, 0.0
      %v3243 = vadd.f32 %v3241, %v3242
      %v3244 = vsel %vm864, %v3209, 0.0
      %v3245 = vadd.f32 %v3243, %v3244
      %v3246 = vsel %vm864, %v3210, 0.0
      %v3247 = vadd.f32 %v3245, %v3246
      %v3248 = vsel %vm864, %v3211, 0.0
      %v3249 = vadd.f32 %v3247, %v3248
      %v3250 = vsel %vm864, %v3212, 0.0
      %v3251 = vadd.f32 %v3249, %v3250
      %v3252 = vsel %vm864, %v3213, 0.0
      %v3253 = vadd.f32 %v3251, %v3252
      %v3254 = vsel %vm864, %v3214, 0.0
      %v3255 = vadd.f32 %v3253, %v3254
      %v3256 = vsel %vm864, %v3215, 0.0
      %v3257 = vadd.f32 %v3255, %v3256
      %v3258 = vsel %vm864, %v3216, 0.0
      %v3259 = vadd.f32 %v3257, %v3258
      %v3260 = vsel %vm864, %v3217, 0.0
      %v3261 = vadd.f32 %v3259, %v3260
      %v3262 = vsel %vm864, %v3218, 0.0
      %v3263 = vadd.f32 %v3261, %v3262
      %v3264 = vsel %vm864, %v3219, 0.0
      %v3265 = vadd.f32 %v3263, %v3264
      %v3266 = vsel %vm864, %v3220, 0.0
      %v3267 = vadd.f32 %v3265, %v3266
      %v3268 = vsel %vm864, %v3221, 0.0
      %v3269 = vadd.f32 %v3267, %v3268
      %v3270 = vsel %vm864, %v3222, 0.0
      %v3271 = vadd.f32 %v3269, %v3270
      %v3272 = vsel %vm864, %v3223, 0.0
      %v3273 = vadd.f32 %v3271, %v3272
      %v3274 = vsel %vm864, %v3224, 0.0
      %v3275 = vadd.f32 %v3273, %v3274
      %v3276 = vsel %vm864, %v3225, 0.0
      %v3277 = vadd.f32 %v3275, %v3276
      %v3278 = vsel %vm864, %v3226, 0.0
      %v3279 = vadd.f32 %v3277, %v3278
      %v3280 = vsel %vm864, %v3227, 0.0
      %v3281 = vadd.f32 %v3279, %v3280
      %v3282 = vsel %vm864, %v3228, 0.0
      %v3283 = vadd.f32 %v3281, %v3282
      %v3284 = vsel %vm864, %v3229, 0.0
      %v3285 = vadd.f32 %v3283, %v3284
      %v3286 = vsel %vm864, %v3230, 0.0
      %v3287 = vadd.f32 %v3285, %v3286
      %v3288 = vsel %vm864, %v3231, 0.0
      %v3289 = vadd.f32 %v3287, %v3288
      %v3290 = vsel %vm864, %v3232, 0.0
      %v3291 = vadd.f32 %v3289, %v3290
      %v3292 = vsel %vm864, %v3233, 0.0
      %v3293 = vadd.f32 %v3291, %v3292
      %v3294 = vsel %vm864, %v3234, 0.0
      %v3295 = vadd.f32 %v3293, %v3294
      %v3296 = vsel %vm864, %v3235, 0.0
      %v3297 = vadd.f32 %v3295, %v3296
      %v3298 = vsel %vm864, %v3236, 0.0
      %v3299 = vadd.f32 %v3297, %v3298
      %v3300 = vrot.slane %v3299, 4
      %v3301 = vadd.f32 %v3299, %v3300
      %v3302 = vrot.slane %v3301, 2
      %v3303 = vadd.f32 %v3301, %v3302
      %v3304 = vrot.slane %v3303, 1
      %v3305 = vadd.f32 %v3303, %v3304
      %vm3306 = vcmask 1040384
      %v3307 = vsel %vm3306, %v3305, 0.0
      %3308 = vst.msk [vmem:[%s215] sm:$0xff] %vm864, %v3307
      %p3309 = scmp.lt.s32.totalorder %s15, 1
      %s3310 = scalar_select %p3309, %s15, 1
      %s3311 = smul.addr %s3310, 8
      %s3312 = scalar_lea.vmem %s4, %s3311
      // Predicated region
      $region37: #{ssim3d_loss.1} parent=35 // pred_check
        %p3313 = pneg %p127
      $region38: #{ssim3d_loss.1} parent=35 // pred_check_branch
        %3315 = sbr.rel (%p3313) target = $region40
      $region39: #{ssim3d_loss.1} parent=35 // pred_region
        _
      $region40: #{ssim3d_loss.1} parent=35 // pred_fallthru
        _
    $region36: #{ssim3d_loss.1} parent=5 // pred_fallthru
      _
    %p3316 = scmp.le.s32.totalorder 2, %s10
    // Predicated region
    $region41: #{ssim3d_loss.1} parent=5 // pred_check
      %p3317 = pneg %p3316
    $region42: #{ssim3d_loss.1} parent=5 // pred_check_branch
      %3319 = sbr.rel (%p3317) target = $region44
    $region43: #{ssim3d_loss.1} parent=5 // pred_region
      %s3320 = ssub.s32 %s10, 2
      // Predicated region
      $region45: #{ssim3d_loss.1} parent=43 // pred_check
        %p3321 = pneg %p133
      $region46: #{ssim3d_loss.1} parent=43 // pred_check_branch
        %3323 = sbr.rel (%p3321) target = $region48
      $region47: #{ssim3d_loss.1} parent=43 // pred_region
        %p3324 = scmp.lt.s32.totalorder %s16, 1
        %s3325 = scalar_select %p3324, %s16, 1
        %s3326 = smul.addr %s3325, 8
        %s3327 = scalar_lea.vmem %s4, %s3326
      $region48: #{ssim3d_loss.1} parent=43 // pred_fallthru
        _
    $region44: #{ssim3d_loss.1} parent=5 // pred_fallthru
      _
  $region6: #{ssim3d_loss.1} parent=0 // loop_footer
    %s14 = sadd.s32 1, %s10
  $region7: #{ssim3d_loss.1} parent=0 // loop_footer_branch
    %9 = sbr.rel target = $region3
  $region8: #{ssim3d_loss.1} parent=0 // loop_exit
    _

</llo_original>
